<compile_context>
chip_gen: v6e
topology: v6e:2x2x1
jax: 0.10.0
libtpu: 0.0.40
codegen_flags: <defaults>
</compile_context>

<pallas_src>
import math
import jax
import jax.numpy as jnp
from jax.experimental import pallas as pl
from jax.experimental.pallas import tpu as pltpu

# Encoder / decoder layer widths (from the PyTorch module __init__)
ENC_DIMS = [100, 50, 20, 8, 3]
DEC_DIMS = [3, 8, 20, 50, 100]
IN_F = ENC_DIMS[0]
OUT_F = DEC_DIMS[-1]


def _round_up(n, m):
    return ((n + m - 1) // m) * m


def autoencoder_kernel(x_ref,
                       w1, b1, w2, b2, w3, b3,     # encoder 100->50->20->8
                       w45, b45,                   # folded  8->3->8 (no activation between)
                       w6, b6, w7, b7, w8, b8,     # decoder 8->20->50->100
                       o_ref):
    """Forward pass on one (TILE_B, 100) batch tile, fully resident in VMEM."""

    def linear(h, w_ref, b_ref):
        # bf16 operands into the MXU, f32 accumulate, f32 bias add on the VPU.
        return jnp.dot(h.astype(jnp.bfloat16), w_ref[...],
                       preferred_element_type=jnp.float32) + b_ref[...]

    h = x_ref[...]                               # already bf16 from the wrapper

    h = jnp.maximum(linear(h, w1, b1), 0.0)      # 100 -> 50, ReLU
    h = jnp.maximum(linear(h, w2, b2), 0.0)      #  50 -> 20, ReLU
    h = jnp.maximum(linear(h, w3, b3), 0.0)      #  20 ->  8, ReLU
    h = jnp.maximum(linear(h, w45, b45), 0.0)    # folded 8 -> 3 -> 8, then decoder ReLU
    h = jnp.maximum(linear(h, w6, b6), 0.0)      #   8 -> 20, ReLU
    h = jnp.maximum(linear(h, w7, b7), 0.0)      #  20 -> 50, ReLU
    h = linear(h, w8, b8)                        #  50 -> 100 (pre-sigmoid)

    # sigmoid: exp and reciprocal both go to the EUP slot; the VPU only does the add.
    o_ref[...] = pl.reciprocal(1.0 + jnp.exp(-h), approx=True).astype(o_ref.dtype)


def init_params(key):
    """PyTorch-style (Kaiming-uniform-ish) init for every Linear layer.

    Returns the UNFOLDED flat list [w1, b1, ..., w8, b8] with weights of shape
    (in, out) in bf16 (MXU operands) and biases of shape (1, out) in f32.
    """
    dims = list(zip(ENC_DIMS[:-1], ENC_DIMS[1:])) + list(zip(DEC_DIMS[:-1], DEC_DIMS[1:]))
    params = []
    for (fan_in, fan_out) in dims:
        key, kw, kb = jax.random.split(key, 3)
        bound = 1.0 / math.sqrt(fan_in)
        w = jax.random.uniform(kw, (fan_in, fan_out), jnp.float32, -bound, bound)
        b = jax.random.uniform(kb, (1, fan_out), jnp.float32, -bound, bound)
        params += [w.astype(jnp.bfloat16), b]
    return params


def _fold_latent(params):
    """Fold Linear(8,3) and Linear(3,8) (no activation between them) into one 8x8 layer."""
    (w1, b1, w2, b2, w3, b3, w4, b4, w5, b5, w6, b6, w7, b7, w8, b8) = params
    w5f = w5.astype(jnp.float32)
    w45 = (w4.astype(jnp.float32) @ w5f).astype(jnp.bfloat16)   # (8, 8) bf16 MXU operand
    b45 = b4 @ w5f + b5                                         # (1, 8) f32
    return [w1, b1, w2, b2, w3, b3, w45, b45, w6, b6, w7, b7, w8, b8]


def autoencoder_forward(x, params, tile_b=1024):
    """Run the fused autoencoder kernel on x of shape (B, 100); returns (B, 100) f32."""
    B, F = x.shape
    assert F == IN_F, (B, F)

    # Batch tile: multiple of 8 sublanes. For small batches, halve the tile so the grid
    # keeps >= 2 steps (v7x megacore gets both TensorCores busy; no-op on v5e/v6e).
    tile_b = min(tile_b, _round_up(B, 8))
    if B <= tile_b:
        tile_b = max(8, _round_up(pl.cdiv(B, 2), 8))
    assert tile_b % 8 == 0
    b_pad = _round_up(B, tile_b)

    # bf16 input tiles: halves input DMA bytes; layer 1 casts to bf16 at the MXU anyway.
    x = x.astype(jnp.bfloat16)
    if b_pad != B:
        x = jnp.pad(x, ((0, b_pad - B), (0, 0)))

    kparams = _fold_latent(params)

    grid = (b_pad // tile_b,)
    x_spec = pl.BlockSpec((tile_b, IN_F), lambda i: (i, 0))
    # Weights / biases: single full-array block pinned to (0, 0) -> VMEM-resident all steps.
    param_specs = [pl.BlockSpec(p.shape, lambda i: (0, 0)) for p in kparams]
    # Real-width output (100 lanes): masked vst is far cheaper than a post-kernel slice copy.
    out_spec = pl.BlockSpec((tile_b, OUT_F), lambda i: (i, 0))

    out = pl.pallas_call(
        autoencoder_kernel,
        out_shape=jax.ShapeDtypeStruct((b_pad, OUT_F), jnp.float32),
        grid=grid,
        in_specs=[x_spec] + param_specs,
        out_specs=out_spec,
        compiler_params=pltpu.CompilerParams(
            dimension_semantics=("parallel",)),
    )(x, *kparams)

    return out if b_pad == B else out[:B]


def reference_forward(x, params):
    """Plain-JAX reference over the UNFOLDED params with the same bf16-MXU /
    f32-accumulate numerics (checks the w4·w5 fold and the approx sigmoid)."""
    h = x.astype(jnp.float32)
    relu_after = {0, 1, 2, 4, 5, 6}     # ReLU after encoder L1-3 and decoder L1-3
    n_layers = len(params) // 2
    for i in range(n_layers):
        w, b = params[2 * i], params[2 * i + 1]
        h = jnp.dot(h.astype(jnp.bfloat16), w, preferred_element_type=jnp.float32) + b
        if i in relu_after:
            h = jnp.maximum(h, 0.0)
    return jax.nn.sigmoid(h)


if __name__ == "__main__":
    key = jax.random.PRNGKey(0)
    key, kx = jax.random.split(key)

    # B=200 with tile_b=64 exercises batch padding (200 -> 256) and a 4-step grid
    # while staying small; production use keeps the default tile_b=1024.
    B = 200
    x = jax.random.uniform(kx, (B, IN_F), jnp.float32)

    params = init_params(key)

    out = jax.block_until_ready(autoencoder_forward(x, params, tile_b=64))
    ref = reference_forward(x, params)

    assert out.shape == (B, OUT_F), out.shape
    # bf16 MXU operands, folded 8->3->8 layer, and approx EUP reciprocal -> loose tolerance.
    max_err = float(jnp.max(jnp.abs(out - ref)))
    assert max_err < 1e-2, max_err

    print("KERNEL_OK")
</pallas_src>

<mosaic_0001>
module attributes {stable_mosaic.version = 11 : i64} {
  func.func @autoencoder_kernel(%arg0: i32, %arg1: memref<64x100xbf16, #tpu.memory_space<vmem>>, %arg2: memref<100x50xbf16, #tpu.memory_space<vmem>>, %arg3: memref<1x50xf32, #tpu.memory_space<vmem>>, %arg4: memref<50x20xbf16, #tpu.memory_space<vmem>>, %arg5: memref<1x20xf32, #tpu.memory_space<vmem>>, %arg6: memref<20x8xbf16, #tpu.memory_space<vmem>>, %arg7: memref<1x8xf32, #tpu.memory_space<vmem>>, %arg8: memref<8x8xbf16, #tpu.memory_space<vmem>>, %arg9: memref<1x8xf32, #tpu.memory_space<vmem>>, %arg10: memref<8x20xbf16, #tpu.memory_space<vmem>>, %arg11: memref<1x20xf32, #tpu.memory_space<vmem>>, %arg12: memref<20x50xbf16, #tpu.memory_space<vmem>>, %arg13: memref<1x50xf32, #tpu.memory_space<vmem>>, %arg14: memref<50x100xbf16, #tpu.memory_space<vmem>>, %arg15: memref<1x100xf32, #tpu.memory_space<vmem>>, %arg16: memref<64x100xf32, #tpu.memory_space<vmem>>) attributes {dimension_semantics = [#tpu.dimension_semantics<parallel>], iteration_bounds = array<i64: 4>, scalar_prefetch = 0 : i64, scratch_operands = 0 : i64, tpu.core_type = #tpu.core_type<tc>, window_params = [{transform_indices = @transform_0, window_bounds = array<i64: 64, 100>}, {pipeline_mode = #tpu.pipeline_mode<synchronous>, transform_indices = @transform_1, window_bounds = array<i64: 100, 50>}, {pipeline_mode = #tpu.pipeline_mode<synchronous>, transform_indices = @transform_2, window_bounds = array<i64: 1, 50>}, {pipeline_mode = #tpu.pipeline_mode<synchronous>, transform_indices = @transform_3, window_bounds = array<i64: 50, 20>}, {pipeline_mode = #tpu.pipeline_mode<synchronous>, transform_indices = @transform_4, window_bounds = array<i64: 1, 20>}, {pipeline_mode = #tpu.pipeline_mode<synchronous>, transform_indices = @transform_5, window_bounds = array<i64: 20, 8>}, {pipeline_mode = #tpu.pipeline_mode<synchronous>, transform_indices = @transform_6, window_bounds = array<i64: 1, 8>}, {pipeline_mode = #tpu.pipeline_mode<synchronous>, transform_indices = @transform_7, window_bounds = array<i64: 8, 8>}, {pipeline_mode = #tpu.pipeline_mode<synchronous>, transform_indices = @transform_8, window_bounds = array<i64: 1, 8>}, {pipeline_mode = #tpu.pipeline_mode<synchronous>, transform_indices = @transform_9, window_bounds = array<i64: 8, 20>}, {pipeline_mode = #tpu.pipeline_mode<synchronous>, transform_indices = @transform_10, window_bounds = array<i64: 1, 20>}, {pipeline_mode = #tpu.pipeline_mode<synchronous>, transform_indices = @transform_11, window_bounds = array<i64: 20, 50>}, {pipeline_mode = #tpu.pipeline_mode<synchronous>, transform_indices = @transform_12, window_bounds = array<i64: 1, 50>}, {pipeline_mode = #tpu.pipeline_mode<synchronous>, transform_indices = @transform_13, window_bounds = array<i64: 50, 100>}, {pipeline_mode = #tpu.pipeline_mode<synchronous>, transform_indices = @transform_14, window_bounds = array<i64: 1, 100>}, {transform_indices = @transform_15, window_bounds = array<i64: 64, 100>}]} {
    %c0 = arith.constant 0 : index
    %c0_0 = arith.constant 0 : index
    %0 = vector.load %arg1[%c0, %c0_0] : memref<64x100xbf16, #tpu.memory_space<vmem>>, vector<64x100xbf16>
    %c0_1 = arith.constant 0 : index
    %c0_2 = arith.constant 0 : index
    %1 = vector.load %arg2[%c0_1, %c0_2] : memref<100x50xbf16, #tpu.memory_space<vmem>>, vector<100x50xbf16>
    %cst = arith.constant dense<0.000000e+00> : vector<64x50xf32>
    %2 = tpu.matmul %0, %1, %cst {dimension_numbers = #tpu.dot_dimension_numbers<[1], [0], [0], [1], [0, 0, 1, 1], [], []>} : vector<64x100xbf16>, vector<100x50xbf16>, vector<64x50xf32> -> vector<64x50xf32>
    %c0_3 = arith.constant 0 : index
    %c0_4 = arith.constant 0 : index
    %3 = vector.load %arg3[%c0_3, %c0_4] : memref<1x50xf32, #tpu.memory_space<vmem>>, vector<1x50xf32>
    %4 = vector.broadcast %3 : vector<1x50xf32> to vector<64x50xf32>
    %5 = arith.addf %2, %4 : vector<64x50xf32>
    %cst_5 = arith.constant 0.000000e+00 : f32
    %6 = vector.broadcast %cst_5 : f32 to vector<64x50xf32>
    %7 = arith.maximumf %5, %6 : vector<64x50xf32>
    %8 = arith.truncf %7 : vector<64x50xf32> to vector<64x50xbf16>
    %c0_6 = arith.constant 0 : index
    %c0_7 = arith.constant 0 : index
    %9 = vector.load %arg4[%c0_6, %c0_7] : memref<50x20xbf16, #tpu.memory_space<vmem>>, vector<50x20xbf16>
    %cst_8 = arith.constant dense<0.000000e+00> : vector<64x20xf32>
    %10 = tpu.matmul %8, %9, %cst_8 {dimension_numbers = #tpu.dot_dimension_numbers<[1], [0], [0], [1], [0, 0, 1, 1], [], []>} : vector<64x50xbf16>, vector<50x20xbf16>, vector<64x20xf32> -> vector<64x20xf32>
    %c0_9 = arith.constant 0 : index
    %c0_10 = arith.constant 0 : index
    %11 = vector.load %arg5[%c0_9, %c0_10] : memref<1x20xf32, #tpu.memory_space<vmem>>, vector<1x20xf32>
    %12 = vector.broadcast %11 : vector<1x20xf32> to vector<64x20xf32>
    %13 = arith.addf %10, %12 : vector<64x20xf32>
    %cst_11 = arith.constant 0.000000e+00 : f32
    %14 = vector.broadcast %cst_11 : f32 to vector<64x20xf32>
    %15 = arith.maximumf %13, %14 : vector<64x20xf32>
    %16 = arith.truncf %15 : vector<64x20xf32> to vector<64x20xbf16>
    %c0_12 = arith.constant 0 : index
    %c0_13 = arith.constant 0 : index
    %17 = vector.load %arg6[%c0_12, %c0_13] : memref<20x8xbf16, #tpu.memory_space<vmem>>, vector<20x8xbf16>
    %cst_14 = arith.constant dense<0.000000e+00> : vector<64x8xf32>
    %18 = tpu.matmul %16, %17, %cst_14 {dimension_numbers = #tpu.dot_dimension_numbers<[1], [0], [0], [1], [0, 0, 1, 1], [], []>} : vector<64x20xbf16>, vector<20x8xbf16>, vector<64x8xf32> -> vector<64x8xf32>
    %c0_15 = arith.constant 0 : index
    %c0_16 = arith.constant 0 : index
    %19 = vector.load %arg7[%c0_15, %c0_16] : memref<1x8xf32, #tpu.memory_space<vmem>>, vector<1x8xf32>
    %20 = vector.broadcast %19 : vector<1x8xf32> to vector<64x8xf32>
    %21 = arith.addf %18, %20 : vector<64x8xf32>
    %cst_17 = arith.constant 0.000000e+00 : f32
    %22 = vector.broadcast %cst_17 : f32 to vector<64x8xf32>
    %23 = arith.maximumf %21, %22 : vector<64x8xf32>
    %24 = arith.truncf %23 : vector<64x8xf32> to vector<64x8xbf16>
    %c0_18 = arith.constant 0 : index
    %c0_19 = arith.constant 0 : index
    %25 = vector.load %arg8[%c0_18, %c0_19] : memref<8x8xbf16, #tpu.memory_space<vmem>>, vector<8x8xbf16>
    %cst_20 = arith.constant dense<0.000000e+00> : vector<64x8xf32>
    %26 = tpu.matmul %24, %25, %cst_20 {dimension_numbers = #tpu.dot_dimension_numbers<[1], [0], [0], [1], [0, 0, 1, 1], [], []>} : vector<64x8xbf16>, vector<8x8xbf16>, vector<64x8xf32> -> vector<64x8xf32>
    %c0_21 = arith.constant 0 : index
    %c0_22 = arith.constant 0 : index
    %27 = vector.load %arg9[%c0_21, %c0_22] : memref<1x8xf32, #tpu.memory_space<vmem>>, vector<1x8xf32>
    %28 = vector.broadcast %27 : vector<1x8xf32> to vector<64x8xf32>
    %29 = arith.addf %26, %28 : vector<64x8xf32>
    %cst_23 = arith.constant 0.000000e+00 : f32
    %30 = vector.broadcast %cst_23 : f32 to vector<64x8xf32>
    %31 = arith.maximumf %29, %30 : vector<64x8xf32>
    %32 = arith.truncf %31 : vector<64x8xf32> to vector<64x8xbf16>
    %c0_24 = arith.constant 0 : index
    %c0_25 = arith.constant 0 : index
    %33 = vector.load %arg10[%c0_24, %c0_25] : memref<8x20xbf16, #tpu.memory_space<vmem>>, vector<8x20xbf16>
    %cst_26 = arith.constant dense<0.000000e+00> : vector<64x20xf32>
    %34 = tpu.matmul %32, %33, %cst_26 {dimension_numbers = #tpu.dot_dimension_numbers<[1], [0], [0], [1], [0, 0, 1, 1], [], []>} : vector<64x8xbf16>, vector<8x20xbf16>, vector<64x20xf32> -> vector<64x20xf32>
    %c0_27 = arith.constant 0 : index
    %c0_28 = arith.constant 0 : index
    %35 = vector.load %arg11[%c0_27, %c0_28] : memref<1x20xf32, #tpu.memory_space<vmem>>, vector<1x20xf32>
    %36 = vector.broadcast %35 : vector<1x20xf32> to vector<64x20xf32>
    %37 = arith.addf %34, %36 : vector<64x20xf32>
    %cst_29 = arith.constant 0.000000e+00 : f32
    %38 = vector.broadcast %cst_29 : f32 to vector<64x20xf32>
    %39 = arith.maximumf %37, %38 : vector<64x20xf32>
    %40 = arith.truncf %39 : vector<64x20xf32> to vector<64x20xbf16>
    %c0_30 = arith.constant 0 : index
    %c0_31 = arith.constant 0 : index
    %41 = vector.load %arg12[%c0_30, %c0_31] : memref<20x50xbf16, #tpu.memory_space<vmem>>, vector<20x50xbf16>
    %cst_32 = arith.constant dense<0.000000e+00> : vector<64x50xf32>
    %42 = tpu.matmul %40, %41, %cst_32 {dimension_numbers = #tpu.dot_dimension_numbers<[1], [0], [0], [1], [0, 0, 1, 1], [], []>} : vector<64x20xbf16>, vector<20x50xbf16>, vector<64x50xf32> -> vector<64x50xf32>
    %c0_33 = arith.constant 0 : index
    %c0_34 = arith.constant 0 : index
    %43 = vector.load %arg13[%c0_33, %c0_34] : memref<1x50xf32, #tpu.memory_space<vmem>>, vector<1x50xf32>
    %44 = vector.broadcast %43 : vector<1x50xf32> to vector<64x50xf32>
    %45 = arith.addf %42, %44 : vector<64x50xf32>
    %cst_35 = arith.constant 0.000000e+00 : f32
    %46 = vector.broadcast %cst_35 : f32 to vector<64x50xf32>
    %47 = arith.maximumf %45, %46 : vector<64x50xf32>
    %48 = arith.truncf %47 : vector<64x50xf32> to vector<64x50xbf16>
    %c0_36 = arith.constant 0 : index
    %c0_37 = arith.constant 0 : index
    %49 = vector.load %arg14[%c0_36, %c0_37] : memref<50x100xbf16, #tpu.memory_space<vmem>>, vector<50x100xbf16>
    %cst_38 = arith.constant dense<0.000000e+00> : vector<64x100xf32>
    %50 = tpu.matmul %48, %49, %cst_38 {dimension_numbers = #tpu.dot_dimension_numbers<[1], [0], [0], [1], [0, 0, 1, 1], [], []>} : vector<64x50xbf16>, vector<50x100xbf16>, vector<64x100xf32> -> vector<64x100xf32>
    %c0_39 = arith.constant 0 : index
    %c0_40 = arith.constant 0 : index
    %51 = vector.load %arg15[%c0_39, %c0_40] : memref<1x100xf32, #tpu.memory_space<vmem>>, vector<1x100xf32>
    %52 = vector.broadcast %51 : vector<1x100xf32> to vector<64x100xf32>
    %53 = arith.addf %50, %52 : vector<64x100xf32>
    %cst_41 = arith.constant 0.000000e+00 : f32
    %54 = vector.broadcast %cst_41 : f32 to vector<64x100xf32>
    %55 = arith.subf %54, %53 : vector<64x100xf32>
    %56 = math.exp %55 : vector<64x100xf32>
    %cst_42 = arith.constant 1.000000e+00 : f32
    %57 = vector.broadcast %cst_42 : f32 to vector<64x100xf32>
    %58 = arith.addf %57, %56 : vector<64x100xf32>
    %59 = tpu.reciprocal %58 {approx = true} : vector<64x100xf32> -> vector<64x100xf32>
    %c0_43 = arith.constant 0 : index
    %c0_44 = arith.constant 0 : index
    %60 = vector.load %arg16[%c0_43, %c0_44] : memref<64x100xf32, #tpu.memory_space<vmem>>, vector<64x100xf32>
    tpu.vector_store %arg16[%c0_43, %c0_44], %59 {strides = array<i32>} : memref<64x100xf32, #tpu.memory_space<vmem>>, vector<64x100xf32>,
    return
  }
  func.func @transform_0(%arg0: i32) -> (i32, i32) {
    %c0_i32 = arith.constant 0 : i32
    %c0_i32_0 = arith.constant 0 : i32
    return %arg0, %c0_i32 : i32, i32
  }
  func.func @transform_1(%arg0: i32) -> (i32, i32) {
    %c0_i32 = arith.constant 0 : i32
    %c0_i32_0 = arith.constant 0 : i32
    %c0_i32_1 = arith.constant 0 : i32
    return %c0_i32, %c0_i32_0 : i32, i32
  }
  func.func @transform_2(%arg0: i32) -> (i32, i32) {
    %c0_i32 = arith.constant 0 : i32
    %c0_i32_0 = arith.constant 0 : i32
    %c0_i32_1 = arith.constant 0 : i32
    return %c0_i32, %c0_i32_0 : i32, i32
  }
  func.func @transform_3(%arg0: i32) -> (i32, i32) {
    %c0_i32 = arith.constant 0 : i32
    %c0_i32_0 = arith.constant 0 : i32
    %c0_i32_1 = arith.constant 0 : i32
    return %c0_i32, %c0_i32_0 : i32, i32
  }
  func.func @transform_4(%arg0: i32) -> (i32, i32) {
    %c0_i32 = arith.constant 0 : i32
    %c0_i32_0 = arith.constant 0 : i32
    %c0_i32_1 = arith.constant 0 : i32
    return %c0_i32, %c0_i32_0 : i32, i32
  }
  func.func @transform_5(%arg0: i32) -> (i32, i32) {
    %c0_i32 = arith.constant 0 : i32
    %c0_i32_0 = arith.constant 0 : i32
    %c0_i32_1 = arith.constant 0 : i32
    return %c0_i32, %c0_i32_0 : i32, i32
  }
  func.func @transform_6(%arg0: i32) -> (i32, i32) {
    %c0_i32 = arith.constant 0 : i32
    %c0_i32_0 = arith.constant 0 : i32
    %c0_i32_1 = arith.constant 0 : i32
    return %c0_i32, %c0_i32_0 : i32, i32
  }
  func.func @transform_7(%arg0: i32) -> (i32, i32) {
    %c0_i32 = arith.constant 0 : i32
    %c0_i32_0 = arith.constant 0 : i32
    %c0_i32_1 = arith.constant 0 : i32
    return %c0_i32, %c0_i32_0 : i32, i32
  }
  func.func @transform_8(%arg0: i32) -> (i32, i32) {
    %c0_i32 = arith.constant 0 : i32
    %c0_i32_0 = arith.constant 0 : i32
    %c0_i32_1 = arith.constant 0 : i32
    return %c0_i32, %c0_i32_0 : i32, i32
  }
  func.func @transform_9(%arg0: i32) -> (i32, i32) {
    %c0_i32 = arith.constant 0 : i32
    %c0_i32_0 = arith.constant 0 : i32
    %c0_i32_1 = arith.constant 0 : i32
    return %c0_i32, %c0_i32_0 : i32, i32
  }
  func.func @transform_10(%arg0: i32) -> (i32, i32) {
    %c0_i32 = arith.constant 0 : i32
    %c0_i32_0 = arith.constant 0 : i32
    %c0_i32_1 = arith.constant 0 : i32
    return %c0_i32, %c0_i32_0 : i32, i32
  }
  func.func @transform_11(%arg0: i32) -> (i32, i32) {
    %c0_i32 = arith.constant 0 : i32
    %c0_i32_0 = arith.constant 0 : i32
    %c0_i32_1 = arith.constant 0 : i32
    return %c0_i32, %c0_i32_0 : i32, i32
  }
  func.func @transform_12(%arg0: i32) -> (i32, i32) {
    %c0_i32 = arith.constant 0 : i32
    %c0_i32_0 = arith.constant 0 : i32
    %c0_i32_1 = arith.constant 0 : i32
    return %c0_i32, %c0_i32_0 : i32, i32
  }
  func.func @transform_13(%arg0: i32) -> (i32, i32) {
    %c0_i32 = arith.constant 0 : i32
    %c0_i32_0 = arith.constant 0 : i32
    %c0_i32_1 = arith.constant 0 : i32
    return %c0_i32, %c0_i32_0 : i32, i32
  }
  func.func @transform_14(%arg0: i32) -> (i32, i32) {
    %c0_i32 = arith.constant 0 : i32
    %c0_i32_0 = arith.constant 0 : i32
    %c0_i32_1 = arith.constant 0 : i32
    return %c0_i32, %c0_i32_0 : i32, i32
  }
  func.func @transform_15(%arg0: i32) -> (i32, i32) {
    %c0_i32 = arith.constant 0 : i32
    %c0_i32_0 = arith.constant 0 : i32
    return %arg0, %c0_i32 : i32, i32
  }
}

</mosaic_0001>

<llo_original>
// kernel: tpu_custom_call.1
$region0: #{tpu_custom_call.1}
  #allocation0 [shape = 'u32[]', space=smem, size = 0x4, offset = 0x4, fixed_abs, tag = 'smem constant byte address 0x4 - core index']
  #allocation1 [shape = 'u32[144,128]{1,0:T(1,128)}', space=vmem, size = 0x12000, scoped, tag = 'internal scratch']
  %s0 = inlined_call_operand.vmem [shape: bf16[256,100], index: 0, kind: input, shape index: {}]
  %s1 = inlined_call_operand.vmem [shape: bf16[100,50], index: 1, kind: input, shape index: {}]
  %s2 = inlined_call_operand.vmem [shape: f32[1,50], index: 2, kind: input, shape index: {}]
  %s3 = inlined_call_operand.vmem [shape: bf16[50,20], index: 3, kind: input, shape index: {}]
  %s4 = inlined_call_operand.vmem [shape: f32[1,20], index: 4, kind: input, shape index: {}]
  %s5 = inlined_call_operand.vmem [shape: bf16[20,8], index: 5, kind: input, shape index: {}]
  %s6 = inlined_call_operand.vmem [shape: f32[1,8], index: 6, kind: input, shape index: {}]
  %s7 = inlined_call_operand.vmem [shape: bf16[8,8], index: 7, kind: input, shape index: {}]
  %s8 = inlined_call_operand.vmem [shape: f32[1,8], index: 8, kind: input, shape index: {}]
  %s9 = inlined_call_operand.vmem [shape: bf16[8,20], index: 9, kind: input, shape index: {}]
  %s10 = inlined_call_operand.vmem [shape: f32[1,20], index: 10, kind: input, shape index: {}]
  %s11 = inlined_call_operand.vmem [shape: bf16[20,50], index: 11, kind: input, shape index: {}]
  %s12 = inlined_call_operand.vmem [shape: f32[1,50], index: 12, kind: input, shape index: {}]
  %s13 = inlined_call_operand.vmem [shape: bf16[50,100], index: 13, kind: input, shape index: {}]
  %s14 = inlined_call_operand.vmem [shape: f32[1,100], index: 14, kind: input, shape index: {}]
  %s15 = inlined_call_operand.vmem [shape: f32[256,100], index: 15, kind: output, shape index: {}]
  %s16 = sld [smem:[#allocation0]]
  $region93: #{tpu_custom_call.1} parent=0
    _
  %s18 = ssub.s32 1, %s16
  %s19 = scalar_select 0, %s18, %s16
  loop: start=0, step=1, limit=6
  $region2: #{tpu_custom_call.1} parent=0 // loop_pre_header
    _
  $region3: #{tpu_custom_call.1} parent=0 // loop_header
    %s21 = sphi 0, %s25
    %p22 = scmp.ge.s32.totalorder %s21, 6
    %s31 = sphi 0, %s33
    %s34 = sphi 0, %s31
    %s35 = sphi 0, %s34
    %s51 = sphi 0, %s35
    %s55 = sphi 0, %s55
    %s57 = sphi 0, %s55
    %s58 = sphi 0, %s57
    %s72 = sphi 0, %s58
    %s76 = sphi 0, %s76
    %s78 = sphi 0, %s76
    %s79 = sphi 0, %s78
    %s93 = sphi 0, %s79
    %s97 = sphi 0, %s97
    %s99 = sphi 0, %s97
    %s100 = sphi 0, %s99
    %s114 = sphi 0, %s100
    %s118 = sphi 0, %s118
    %s120 = sphi 0, %s118
    %s121 = sphi 0, %s120
    %s135 = sphi 0, %s121
    %s139 = sphi 0, %s139
    %s141 = sphi 0, %s139
    %s142 = sphi 0, %s141
    %s156 = sphi 0, %s142
    %s160 = sphi 0, %s160
    %s162 = sphi 0, %s160
    %s163 = sphi 0, %s162
    %s177 = sphi 0, %s163
    %s181 = sphi 0, %s181
    %s183 = sphi 0, %s181
    %s184 = sphi 0, %s183
    %s198 = sphi 0, %s184
    %s202 = sphi 0, %s202
    %s204 = sphi 0, %s202
    %s205 = sphi 0, %s204
    %s219 = sphi 0, %s205
    %s223 = sphi 0, %s223
    %s225 = sphi 0, %s223
    %s226 = sphi 0, %s225
    %s240 = sphi 0, %s226
    %s244 = sphi 0, %s244
    %s246 = sphi 0, %s244
    %s247 = sphi 0, %s246
    %s261 = sphi 0, %s247
    %s265 = sphi 0, %s265
    %s267 = sphi 0, %s265
    %s268 = sphi 0, %s267
    %s282 = sphi 0, %s268
    %s286 = sphi 0, %s286
    %s288 = sphi 0, %s286
    %s289 = sphi 0, %s288
    %s303 = sphi 0, %s289
    %s307 = sphi 0, %s307
    %s309 = sphi 0, %s307
    %s310 = sphi 0, %s309
    %s324 = sphi 0, %s310
    %s328 = sphi 0, %s328
    %s330 = sphi 0, %s328
    %s331 = sphi 0, %s330
    %s345 = sphi 0, %s331
    %s351 = sphi 0, %s353
    %s354 = sphi 0, %s351
    %s355 = sphi 0, %s354
    %s371 = sphi 0, %s355
  $region4: #{tpu_custom_call.1} parent=0 // loop_header_branch
    %24 = sbr.rel (%p22) target = $region8
  $region5: #{tpu_custom_call.1} parent=0 // loop_body
    %s26 = ssub.s32 %s21, 1
    %s27 = ssub.s32 %s21, 2
    %s28 = sadd.s32 %s21, 1
    %s29 = ssub.s32 %s21, %s28
    %p30 = scmp.eq.s32.totalorder %s29, 0
    %s32 = sadd.s32 %s31, 1
    %s33 = scalar_select %p30, %s31, %s32
    %p36 = pneg %p30
    %p37 = scmp.eq.s32.totalorder %s21, 3
    %p38 = por %p36, %p37
    %p39 = scmp.ne.s32.totalorder %s31, %s34
    %p40 = scmp.eq.s32.totalorder %s21, 0
    %p41 = por %p39, %p40
    %p42 = scmp.ne.s32.totalorder %s31, %s34
    %p43 = scmp.eq.s32.totalorder %s26, 3
    %p44 = por %p42, %p43
    %p45 = scmp.ne.s32.totalorder %s34, %s35
    %p46 = scmp.eq.s32.totalorder %s26, 0
    %p47 = por %p45, %p46
    %p48 = scmp.ne.s32.totalorder %s34, %s35
    %p49 = scmp.eq.s32.totalorder %s27, 3
    %p50 = por %p48, %p49
    %p52 = scmp.ne.s32.totalorder %s35, %s51
    %p53 = scmp.eq.s32.totalorder %s27, 0
    %p54 = por %p52, %p53
    %s56 = sadd.s32 %s55, 1
    %p59 = scmp.eq.s32.totalorder %s21, 3
    %p60 = scmp.ne.s32.totalorder %s55, %s57
    %p61 = scmp.eq.s32.totalorder %s21, 0
    %p62 = por %p60, %p61
    %p63 = scmp.ne.s32.totalorder %s55, %s57
    %p64 = scmp.eq.s32.totalorder %s26, 3
    %p65 = por %p63, %p64
    %p66 = scmp.ne.s32.totalorder %s57, %s58
    %p67 = scmp.eq.s32.totalorder %s26, 0
    %p68 = por %p66, %p67
    %p69 = scmp.ne.s32.totalorder %s57, %s58
    %p70 = scmp.eq.s32.totalorder %s27, 3
    %p71 = por %p69, %p70
    %p73 = scmp.ne.s32.totalorder %s58, %s72
    %p74 = scmp.eq.s32.totalorder %s27, 0
    %p75 = por %p73, %p74
    %s77 = sadd.s32 %s76, 1
    %p80 = scmp.eq.s32.totalorder %s21, 3
    %p81 = scmp.ne.s32.totalorder %s76, %s78
    %p82 = scmp.eq.s32.totalorder %s21, 0
    %p83 = por %p81, %p82
    %p84 = scmp.ne.s32.totalorder %s76, %s78
    %p85 = scmp.eq.s32.totalorder %s26, 3
    %p86 = por %p84, %p85
    %p87 = scmp.ne.s32.totalorder %s78, %s79
    %p88 = scmp.eq.s32.totalorder %s26, 0
    %p89 = por %p87, %p88
    %p90 = scmp.ne.s32.totalorder %s78, %s79
    %p91 = scmp.eq.s32.totalorder %s27, 3
    %p92 = por %p90, %p91
    %p94 = scmp.ne.s32.totalorder %s79, %s93
    %p95 = scmp.eq.s32.totalorder %s27, 0
    %p96 = por %p94, %p95
    %s98 = sadd.s32 %s97, 1
    %p101 = scmp.eq.s32.totalorder %s21, 3
    %p102 = scmp.ne.s32.totalorder %s97, %s99
    %p103 = scmp.eq.s32.totalorder %s21, 0
    %p104 = por %p102, %p103
    %p105 = scmp.ne.s32.totalorder %s97, %s99
    %p106 = scmp.eq.s32.totalorder %s26, 3
    %p107 = por %p105, %p106
    %p108 = scmp.ne.s32.totalorder %s99, %s100
    %p109 = scmp.eq.s32.totalorder %s26, 0
    %p110 = por %p108, %p109
    %p111 = scmp.ne.s32.totalorder %s99, %s100
    %p112 = scmp.eq.s32.totalorder %s27, 3
    %p113 = por %p111, %p112
    %p115 = scmp.ne.s32.totalorder %s100, %s114
    %p116 = scmp.eq.s32.totalorder %s27, 0
    %p117 = por %p115, %p116
    %s119 = sadd.s32 %s118, 1
    %p122 = scmp.eq.s32.totalorder %s21, 3
    %p123 = scmp.ne.s32.totalorder %s118, %s120
    %p124 = scmp.eq.s32.totalorder %s21, 0
    %p125 = por %p123, %p124
    %p126 = scmp.ne.s32.totalorder %s118, %s120
    %p127 = scmp.eq.s32.totalorder %s26, 3
    %p128 = por %p126, %p127
    %p129 = scmp.ne.s32.totalorder %s120, %s121
    %p130 = scmp.eq.s32.totalorder %s26, 0
    %p131 = por %p129, %p130
    %p132 = scmp.ne.s32.totalorder %s120, %s121
    %p133 = scmp.eq.s32.totalorder %s27, 3
    %p134 = por %p132, %p133
    %p136 = scmp.ne.s32.totalorder %s121, %s135
    %p137 = scmp.eq.s32.totalorder %s27, 0
    %p138 = por %p136, %p137
    %s140 = sadd.s32 %s139, 1
    %p143 = scmp.eq.s32.totalorder %s21, 3
    %p144 = scmp.ne.s32.totalorder %s139, %s141
    %p145 = scmp.eq.s32.totalorder %s21, 0
    %p146 = por %p144, %p145
    %p147 = scmp.ne.s32.totalorder %s139, %s141
    %p148 = scmp.eq.s32.totalorder %s26, 3
    %p149 = por %p147, %p148
    %p150 = scmp.ne.s32.totalorder %s141, %s142
    %p151 = scmp.eq.s32.totalorder %s26, 0
    %p152 = por %p150, %p151
    %p153 = scmp.ne.s32.totalorder %s141, %s142
    %p154 = scmp.eq.s32.totalorder %s27, 3
    %p155 = por %p153, %p154
    %p157 = scmp.ne.s32.totalorder %s142, %s156
    %p158 = scmp.eq.s32.totalorder %s27, 0
    %p159 = por %p157, %p158
    %s161 = sadd.s32 %s160, 1
    %p164 = scmp.eq.s32.totalorder %s21, 3
    %p165 = scmp.ne.s32.totalorder %s160, %s162
    %p166 = scmp.eq.s32.totalorder %s21, 0
    %p167 = por %p165, %p166
    %p168 = scmp.ne.s32.totalorder %s160, %s162
    %p169 = scmp.eq.s32.totalorder %s26, 3
    %p170 = por %p168, %p169
    %p171 = scmp.ne.s32.totalorder %s162, %s163
    %p172 = scmp.eq.s32.totalorder %s26, 0
    %p173 = por %p171, %p172
    %p174 = scmp.ne.s32.totalorder %s162, %s163
    %p175 = scmp.eq.s32.totalorder %s27, 3
    %p176 = por %p174, %p175
    %p178 = scmp.ne.s32.totalorder %s163, %s177
    %p179 = scmp.eq.s32.totalorder %s27, 0
    %p180 = por %p178, %p179
    %s182 = sadd.s32 %s181, 1
    %p185 = scmp.eq.s32.totalorder %s21, 3
    %p186 = scmp.ne.s32.totalorder %s181, %s183
    %p187 = scmp.eq.s32.totalorder %s21, 0
    %p188 = por %p186, %p187
    %p189 = scmp.ne.s32.totalorder %s181, %s183
    %p190 = scmp.eq.s32.totalorder %s26, 3
    %p191 = por %p189, %p190
    %p192 = scmp.ne.s32.totalorder %s183, %s184
    %p193 = scmp.eq.s32.totalorder %s26, 0
    %p194 = por %p192, %p193
    %p195 = scmp.ne.s32.totalorder %s183, %s184
    %p196 = scmp.eq.s32.totalorder %s27, 3
    %p197 = por %p195, %p196
    %p199 = scmp.ne.s32.totalorder %s184, %s198
    %p200 = scmp.eq.s32.totalorder %s27, 0
    %p201 = por %p199, %p200
    %s203 = sadd.s32 %s202, 1
    %p206 = scmp.eq.s32.totalorder %s21, 3
    %p207 = scmp.ne.s32.totalorder %s202, %s204
    %p208 = scmp.eq.s32.totalorder %s21, 0
    %p209 = por %p207, %p208
    %p210 = scmp.ne.s32.totalorder %s202, %s204
    %p211 = scmp.eq.s32.totalorder %s26, 3
    %p212 = por %p210, %p211
    %p213 = scmp.ne.s32.totalorder %s204, %s205
    %p214 = scmp.eq.s32.totalorder %s26, 0
    %p215 = por %p213, %p214
    %p216 = scmp.ne.s32.totalorder %s204, %s205
    %p217 = scmp.eq.s32.totalorder %s27, 3
    %p218 = por %p216, %p217
    %p220 = scmp.ne.s32.totalorder %s205, %s219
    %p221 = scmp.eq.s32.totalorder %s27, 0
    %p222 = por %p220, %p221
    %s224 = sadd.s32 %s223, 1
    %p227 = scmp.eq.s32.totalorder %s21, 3
    %p228 = scmp.ne.s32.totalorder %s223, %s225
    %p229 = scmp.eq.s32.totalorder %s21, 0
    %p230 = por %p228, %p229
    %p231 = scmp.ne.s32.totalorder %s223, %s225
    %p232 = scmp.eq.s32.totalorder %s26, 3
    %p233 = por %p231, %p232
    %p234 = scmp.ne.s32.totalorder %s225, %s226
    %p235 = scmp.eq.s32.totalorder %s26, 0
    %p236 = por %p234, %p235
    %p237 = scmp.ne.s32.totalorder %s225, %s226
    %p238 = scmp.eq.s32.totalorder %s27, 3
    %p239 = por %p237, %p238
    %p241 = scmp.ne.s32.totalorder %s226, %s240
    %p242 = scmp.eq.s32.totalorder %s27, 0
    %p243 = por %p241, %p242
    %s245 = sadd.s32 %s244, 1
    %p248 = scmp.eq.s32.totalorder %s21, 3
    %p249 = scmp.ne.s32.totalorder %s244, %s246
    %p250 = scmp.eq.s32.totalorder %s21, 0
    %p251 = por %p249, %p250
    %p252 = scmp.ne.s32.totalorder %s244, %s246
    %p253 = scmp.eq.s32.totalorder %s26, 3
    %p254 = por %p252, %p253
    %p255 = scmp.ne.s32.totalorder %s246, %s247
    %p256 = scmp.eq.s32.totalorder %s26, 0
    %p257 = por %p255, %p256
    %p258 = scmp.ne.s32.totalorder %s246, %s247
    %p259 = scmp.eq.s32.totalorder %s27, 3
    %p260 = por %p258, %p259
    %p262 = scmp.ne.s32.totalorder %s247, %s261
    %p263 = scmp.eq.s32.totalorder %s27, 0
    %p264 = por %p262, %p263
    %s266 = sadd.s32 %s265, 1
    %p269 = scmp.eq.s32.totalorder %s21, 3
    %p270 = scmp.ne.s32.totalorder %s265, %s267
    %p271 = scmp.eq.s32.totalorder %s21, 0
    %p272 = por %p270, %p271
    %p273 = scmp.ne.s32.totalorder %s265, %s267
    %p274 = scmp.eq.s32.totalorder %s26, 3
    %p275 = por %p273, %p274
    %p276 = scmp.ne.s32.totalorder %s267, %s268
    %p277 = scmp.eq.s32.totalorder %s26, 0
    %p278 = por %p276, %p277
    %p279 = scmp.ne.s32.totalorder %s267, %s268
    %p280 = scmp.eq.s32.totalorder %s27, 3
    %p281 = por %p279, %p280
    %p283 = scmp.ne.s32.totalorder %s268, %s282
    %p284 = scmp.eq.s32.totalorder %s27, 0
    %p285 = por %p283, %p284
    %s287 = sadd.s32 %s286, 1
    %p290 = scmp.eq.s32.totalorder %s21, 3
    %p291 = scmp.ne.s32.totalorder %s286, %s288
    %p292 = scmp.eq.s32.totalorder %s21, 0
    %p293 = por %p291, %p292
    %p294 = scmp.ne.s32.totalorder %s286, %s288
    %p295 = scmp.eq.s32.totalorder %s26, 3
    %p296 = por %p294, %p295
    %p297 = scmp.ne.s32.totalorder %s288, %s289
    %p298 = scmp.eq.s32.totalorder %s26, 0
    %p299 = por %p297, %p298
    %p300 = scmp.ne.s32.totalorder %s288, %s289
    %p301 = scmp.eq.s32.totalorder %s27, 3
    %p302 = por %p300, %p301
    %p304 = scmp.ne.s32.totalorder %s289, %s303
    %p305 = scmp.eq.s32.totalorder %s27, 0
    %p306 = por %p304, %p305
    %s308 = sadd.s32 %s307, 1
    %p311 = scmp.eq.s32.totalorder %s21, 3
    %p312 = scmp.ne.s32.totalorder %s307, %s309
    %p313 = scmp.eq.s32.totalorder %s21, 0
    %p314 = por %p312, %p313
    %p315 = scmp.ne.s32.totalorder %s307, %s309
    %p316 = scmp.eq.s32.totalorder %s26, 3
    %p317 = por %p315, %p316
    %p318 = scmp.ne.s32.totalorder %s309, %s310
    %p319 = scmp.eq.s32.totalorder %s26, 0
    %p320 = por %p318, %p319
    %p321 = scmp.ne.s32.totalorder %s309, %s310
    %p322 = scmp.eq.s32.totalorder %s27, 3
    %p323 = por %p321, %p322
    %p325 = scmp.ne.s32.totalorder %s310, %s324
    %p326 = scmp.eq.s32.totalorder %s27, 0
    %p327 = por %p325, %p326
    %s329 = sadd.s32 %s328, 1
    %p332 = scmp.eq.s32.totalorder %s21, 3
    %p333 = scmp.ne.s32.totalorder %s328, %s330
    %p334 = scmp.eq.s32.totalorder %s21, 0
    %p335 = por %p333, %p334
    %p336 = scmp.ne.s32.totalorder %s328, %s330
    %p337 = scmp.eq.s32.totalorder %s26, 3
    %p338 = por %p336, %p337
    %p339 = scmp.ne.s32.totalorder %s330, %s331
    %p340 = scmp.eq.s32.totalorder %s26, 0
    %p341 = por %p339, %p340
    %p342 = scmp.ne.s32.totalorder %s330, %s331
    %p343 = scmp.eq.s32.totalorder %s27, 3
    %p344 = por %p342, %p343
    %p346 = scmp.ne.s32.totalorder %s331, %s345
    %p347 = scmp.eq.s32.totalorder %s27, 0
    %p348 = por %p346, %p347
    %s349 = ssub.s32 %s21, %s28
    %p350 = scmp.eq.s32.totalorder %s349, 0
    %s352 = sadd.s32 %s351, 1
    %s353 = scalar_select %p350, %s351, %s352
    %p356 = pneg %p350
    %p357 = scmp.eq.s32.totalorder %s21, 3
    %p358 = por %p356, %p357
    %p359 = scmp.ne.s32.totalorder %s351, %s354
    %p360 = scmp.eq.s32.totalorder %s21, 0
    %p361 = por %p359, %p360
    %p362 = scmp.ne.s32.totalorder %s351, %s354
    %p363 = scmp.eq.s32.totalorder %s26, 3
    %p364 = por %p362, %p363
    %p365 = scmp.ne.s32.totalorder %s354, %s355
    %p366 = scmp.eq.s32.totalorder %s26, 0
    %p367 = por %p365, %p366
    %p368 = scmp.ne.s32.totalorder %s354, %s355
    %p369 = scmp.eq.s32.totalorder %s27, 3
    %p370 = por %p368, %p369
    %p372 = scmp.ne.s32.totalorder %s355, %s371
    %p373 = scmp.eq.s32.totalorder %s27, 0
    %p374 = por %p372, %p373
    %p375 = scmp.le.s32.totalorder 1, %s21
    %p376 = scmp.lt.s32.totalorder %s21, 5
    %p377 = pnand %p375, %p376
    %p378 = pneg %p377
    // Predicated region
    $region9: #{tpu_custom_call.1} parent=5 // pred_check
      _
    $region10: #{tpu_custom_call.1} parent=5 // pred_check_branch
      %380 = sbr.rel (%p377) target = $region12
    $region11: #{tpu_custom_call.1} parent=5 // pred_region
      %s381 = ssub.s32 %s21, 1
      // Predicated region
      $region13: #{tpu_custom_call.1} parent=11 // pred_check
        %p382 = pneg %p68
      $region14: #{tpu_custom_call.1} parent=11 // pred_check_branch
        %384 = sbr.rel (%p382) target = $region16
      $region15: #{tpu_custom_call.1} parent=11 // pred_region
        _
      $region16: #{tpu_custom_call.1} parent=11 // pred_fallthru
        _
      // Predicated region
      $region17: #{tpu_custom_call.1} parent=11 // pred_check
        %p385 = pneg %p89
      $region18: #{tpu_custom_call.1} parent=11 // pred_check_branch
        %387 = sbr.rel (%p385) target = $region20
      $region19: #{tpu_custom_call.1} parent=11 // pred_region
        _
      $region20: #{tpu_custom_call.1} parent=11 // pred_fallthru
        _
      // Predicated region
      $region21: #{tpu_custom_call.1} parent=11 // pred_check
        %p388 = pneg %p110
      $region22: #{tpu_custom_call.1} parent=11 // pred_check_branch
        %390 = sbr.rel (%p388) target = $region24
      $region23: #{tpu_custom_call.1} parent=11 // pred_region
        _
      $region24: #{tpu_custom_call.1} parent=11 // pred_fallthru
        _
      // Predicated region
      $region25: #{tpu_custom_call.1} parent=11 // pred_check
        %p391 = pneg %p131
      $region26: #{tpu_custom_call.1} parent=11 // pred_check_branch
        %393 = sbr.rel (%p391) target = $region28
      $region27: #{tpu_custom_call.1} parent=11 // pred_region
        _
      $region28: #{tpu_custom_call.1} parent=11 // pred_fallthru
        _
      // Predicated region
      $region29: #{tpu_custom_call.1} parent=11 // pred_check
        %p394 = pneg %p152
      $region30: #{tpu_custom_call.1} parent=11 // pred_check_branch
        %396 = sbr.rel (%p394) target = $region32
      $region31: #{tpu_custom_call.1} parent=11 // pred_region
        _
      $region32: #{tpu_custom_call.1} parent=11 // pred_fallthru
        _
      // Predicated region
      $region33: #{tpu_custom_call.1} parent=11 // pred_check
        %p397 = pneg %p173
      $region34: #{tpu_custom_call.1} parent=11 // pred_check_branch
        %399 = sbr.rel (%p397) target = $region36
      $region35: #{tpu_custom_call.1} parent=11 // pred_region
        _
      $region36: #{tpu_custom_call.1} parent=11 // pred_fallthru
        _
      // Predicated region
      $region37: #{tpu_custom_call.1} parent=11 // pred_check
        %p400 = pneg %p194
      $region38: #{tpu_custom_call.1} parent=11 // pred_check_branch
        %402 = sbr.rel (%p400) target = $region40
      $region39: #{tpu_custom_call.1} parent=11 // pred_region
        _
      $region40: #{tpu_custom_call.1} parent=11 // pred_fallthru
        _
      // Predicated region
      $region41: #{tpu_custom_call.1} parent=11 // pred_check
        %p403 = pneg %p215
      $region42: #{tpu_custom_call.1} parent=11 // pred_check_branch
        %405 = sbr.rel (%p403) target = $region44
      $region43: #{tpu_custom_call.1} parent=11 // pred_region
        _
      $region44: #{tpu_custom_call.1} parent=11 // pred_fallthru
        _
      // Predicated region
      $region45: #{tpu_custom_call.1} parent=11 // pred_check
        %p406 = pneg %p236
      $region46: #{tpu_custom_call.1} parent=11 // pred_check_branch
        %408 = sbr.rel (%p406) target = $region48
      $region47: #{tpu_custom_call.1} parent=11 // pred_region
        _
      $region48: #{tpu_custom_call.1} parent=11 // pred_fallthru
        _
      // Predicated region
      $region49: #{tpu_custom_call.1} parent=11 // pred_check
        %p409 = pneg %p257
      $region50: #{tpu_custom_call.1} parent=11 // pred_check_branch
        %411 = sbr.rel (%p409) target = $region52
      $region51: #{tpu_custom_call.1} parent=11 // pred_region
        _
      $region52: #{tpu_custom_call.1} parent=11 // pred_fallthru
        _
      // Predicated region
      $region53: #{tpu_custom_call.1} parent=11 // pred_check
        %p412 = pneg %p278
      $region54: #{tpu_custom_call.1} parent=11 // pred_check_branch
        %414 = sbr.rel (%p412) target = $region56
      $region55: #{tpu_custom_call.1} parent=11 // pred_region
        _
      $region56: #{tpu_custom_call.1} parent=11 // pred_fallthru
        _
      // Predicated region
      $region57: #{tpu_custom_call.1} parent=11 // pred_check
        %p415 = pneg %p299
      $region58: #{tpu_custom_call.1} parent=11 // pred_check_branch
        %417 = sbr.rel (%p415) target = $region60
      $region59: #{tpu_custom_call.1} parent=11 // pred_region
        _
      $region60: #{tpu_custom_call.1} parent=11 // pred_fallthru
        _
      // Predicated region
      $region61: #{tpu_custom_call.1} parent=11 // pred_check
        %p418 = pneg %p320
      $region62: #{tpu_custom_call.1} parent=11 // pred_check_branch
        %420 = sbr.rel (%p418) target = $region64
      $region63: #{tpu_custom_call.1} parent=11 // pred_region
        _
      $region64: #{tpu_custom_call.1} parent=11 // pred_fallthru
        _
      // Predicated region
      $region65: #{tpu_custom_call.1} parent=11 // pred_check
        %p421 = pneg %p341
      $region66: #{tpu_custom_call.1} parent=11 // pred_check_branch
        %423 = sbr.rel (%p421) target = $region68
      $region67: #{tpu_custom_call.1} parent=11 // pred_region
        _
      $region68: #{tpu_custom_call.1} parent=11 // pred_fallthru
        _
    $region12: #{tpu_custom_call.1} parent=5 // pred_fallthru
      _
    %p424 = scmp.lt.s32.totalorder %s21, 4
    // Predicated region
    $region69: #{tpu_custom_call.1} parent=5 // pred_check
      %p425 = pneg %p424
    $region70: #{tpu_custom_call.1} parent=5 // pred_check_branch
      %427 = sbr.rel (%p425) target = $region72
    $region71: #{tpu_custom_call.1} parent=5 // pred_region
      // Predicated region
      $region73: #{tpu_custom_call.1} parent=71 // pred_check
        %p428 = pneg %p41
      $region74: #{tpu_custom_call.1} parent=71 // pred_check_branch
        %430 = sbr.rel (%p428) target = $region76
      $region75: #{tpu_custom_call.1} parent=71 // pred_region
        %s431 = smul.u32 8, %s21
        %p432 = scmp.lt.s32.totalorder %s431, 31
        %s433 = scalar_select %p432, %s431, 31
        %s434 = smul.addr %s433, 4
        %s435 = scalar_lea.vmem %s0, %s434
        %s436 = smul.u32 8, %s21
      $region76: #{tpu_custom_call.1} parent=71 // pred_fallthru
        _
    $region72: #{tpu_custom_call.1} parent=5 // pred_fallthru
      _
    %p437 = scmp.le.s32.totalorder 1, %s21
    %p438 = scmp.lt.s32.totalorder %s21, 5
    %p439 = pnand %p437, %p438
    %p440 = pneg %p439
    // Predicated region
    $region77: #{tpu_custom_call.1} parent=5 // pred_check
      _
    $region78: #{tpu_custom_call.1} parent=5 // pred_check_branch
      %442 = sbr.rel (%p439) target = $region80
    $region79: #{tpu_custom_call.1} parent=5 // pred_region
      %s443 = ssub.s32 %s21, 1
      %s444 = smul.u32 8, %s26
      %p445 = scmp.lt.s32.totalorder %s444, 31
      %s446 = scalar_select %p445, %s444, 31
      %s447 = smul.addr %s446, 4
      %s448 = scalar_lea.vmem %s0, %s447
      %p449 = pneg %p47
      %p450 = pneg %p44
      %p451 = pneg %p68
      %p452 = pneg %p65
      %p453 = pneg %p89
      %p454 = pneg %p86
      %p455 = pneg %p110
      %p456 = pneg %p107
      %p457 = pneg %p131
      %p458 = pneg %p128
      %p459 = pneg %p152
      %p460 = pneg %p149
      %p461 = pneg %p173
      %p462 = pneg %p170
      %p463 = pneg %p194
      %p464 = pneg %p191
      %p465 = pneg %p215
      %p466 = pneg %p212
      %p467 = pneg %p236
      %p468 = pneg %p233
      %p469 = pneg %p257
      %p470 = pneg %p254
      %p471 = pneg %p278
      %p472 = pneg %p275
      %p473 = pneg %p299
      %p474 = pneg %p296
      %p475 = pneg %p320
      %p476 = pneg %p317
      %p477 = pneg %p341
      %p478 = pneg %p338
      %p479 = pneg %p367
      %p480 = pneg %p364
      %s481 = smul.u32 8, %s26
      %p482 = scmp.lt.s32.totalorder %s481, 31
      %s483 = scalar_select %p482, %s481, 31
      %s484 = smul.addr %s483, 8
      %s485 = scalar_lea.vmem %s15, %s484
      %s486 = smul.u32 8, %s26
      %p487 = scmp.lt.s32.totalorder %s486, 31
      %s488 = scalar_select %p487, %s486, 31
      %s489 = smul.addr %s488, 4
      %s490 = scalar_lea.vmem %s0, %s489
      %s491 = smul.u32 8, %s26
      %s492 = smul.u32 8, %s26
      %p493 = scmp.lt.s32.totalorder %s492, 31
      %s494 = scalar_select %p493, %s492, 31
      %s495 = smul.addr %s494, 8
      %s496 = scalar_lea.vmem %s15, %s495
      %s497 = smul.u32 8, %s26
      %v499 = vld [vmem:[%s490] sm:$0xf]
      %v500 = vld [vmem:[%s490 + $0x4] sm:$0xf]
      %v501 = vld [vmem:[%s490 + $0x8] sm:$0xf]
      %v502 = vld [vmem:[%s490 + $0xc] sm:$0xf]
      %v503 = vld [vmem:[%s490 + $0x10] sm:$0xf]
      %v504 = vld [vmem:[%s490 + $0x14] sm:$0xf]
      %v505 = vld [vmem:[%s490 + $0x18] sm:$0xf]
      %v506 = vld [vmem:[%s490 + $0x1c] sm:$0xf]
      %v507 = vld [vmem:[%s1] sm:$0xf]
      %v508 = vld [vmem:[%s1 + $0x4] sm:$0xf]
      %v509 = vld [vmem:[%s1 + $0x8] sm:$0xf]
      %v510 = vld [vmem:[%s1 + $0xc] sm:$0xf]
      %v511 = vld [vmem:[%s1 + $0x10] sm:$0xf]
      %v512 = vld [vmem:[%s1 + $0x14] sm:$0xf]
      %v513 = vld [vmem:[%s1 + $0x18] sm:$0xf]
      %v514 = vld [vmem:[%s1 + $0x1c] sm:$0xf]
      %v515 = vld [vmem:[%s1 + $0x20] sm:$0xf]
      %v516 = vld [vmem:[%s1 + $0x24] sm:$0xf]
      %v517 = vld [vmem:[%s1 + $0x28] sm:$0xf]
      %v518 = vld [vmem:[%s1 + $0x2c] sm:$0xf]
      %v519 = vld [vmem:[%s1 + $0x30] sm:$0x3]
      %v520 = vld [vmem:[%s2] sm:$0x1]
      %v522 = vlaneseq
      %v523 = vshrl.u32 %v522, 7
      %v524 = vsub.s32 0, %v523
      %v525 = vrot.slane %v520, %v524
      %v535 = vunpack.c.l.b16 %v499
      %v536 = vunpack.c.l.b16 %v500
      %v537 = vunpack.c.l.b16 %v501
      %v538 = vunpack.c.l.b16 %v502
      %v539 = vunpack.c.l.b16 %v503
      %v540 = vunpack.c.l.b16 %v504
      %v541 = vunpack.c.l.b16 %v505
      %v542 = vunpack.c.l.b16 %v506
      %v543 = vpack.c.b16 %v536, %v535
      %v544 = vpack.c.b16 %v538, %v537
      %v545 = vpack.c.b16 %v540, %v539
      %v546 = vpack.c.b16 %v542, %v541
      %v560 = vunpack.c.l.b16 %v507
      %v561 = vunpack.c.l.b16 %v508
      %v562 = vunpack.c.l.b16 %v509
      %v563 = vunpack.c.l.b16 %v510
      %v564 = vunpack.c.l.b16 %v511
      %v565 = vunpack.c.l.b16 %v512
      %v566 = vunpack.c.l.b16 %v513
      %v567 = vunpack.c.l.b16 %v514
      %v568 = vunpack.c.l.b16 %v515
      %v569 = vunpack.c.l.b16 %v516
      %v570 = vunpack.c.l.b16 %v517
      %v571 = vunpack.c.l.b16 %v518
      %v572 = vunpack.c.l.b16 %v519
      %v573 = vpack.c.b16 %v561, %v560
      %v574 = vpack.c.b16 %v563, %v562
      %v575 = vpack.c.b16 %v565, %v564
      %v576 = vpack.c.b16 %v567, %v566
      %v577 = vpack.c.b16 %v569, %v568
      %v578 = vpack.c.b16 %v571, %v570
      %v579 = vpack.c.b16 %v572, %v572
      %vm586 = vcmask 818176
      %v588 = vsel %vm586, %v543, 0
      %v591 = vsel %vm586, %v544, 0
      %v594 = vsel %vm586, %v545, 0
      %v597 = vsel %vm586, %v546, 0
      %vm599 = vcmask 1041408
      %v601 = vsel %vm599, %v579, 0
      %603 = vmatprep.subr.bf16.mxu0 0
      %604 = vmatpush1.bf16.msra.mxu0 0
      %605 = vmatprep.subr.bf16.mxu0 0
      %606 = vmatpush1.bf16.msra.mxu0 %v601
      %607 = vmatprep.subr.bf16.mxu0 0
      %608 = vmatpush1.bf16.msra.mxu0 %v578
      %609 = vmatprep.subr.bf16.mxu0 0
      %610 = vmatpush1.bf16.msra.mxu0 %v577
      %611 = vmatprep.subr.bf16.mxu0 0
      %612 = vmatpush1.bf16.msra.mxu0 %v576
      %613 = vmatprep.subr.bf16.mxu0 0
      %614 = vmatpush1.bf16.msra.mxu0 %v575
      %615 = vmatprep.subr.bf16.mxu0 0
      %616 = vmatpush1.bf16.msra.mxu0 %v574
      %617 = vmatprep.subr.bf16.mxu0 0
      %618 = vmatpush1.bf16.msra.mxu0 %v573
      %619 = vmatprep.subr.bf16.mxu0 0
      %620 = vmatpush2.bf16.msra.mxu0 0
      %621 = vmatprep.subr.bf16.mxu0 0
      %622 = vmatpush2.bf16.msra.mxu0 0
      %623 = vmatprep.subr.bf16.mxu0 0
      %624 = vmatpush2.bf16.msra.mxu0 0
      %625 = vmatprep.subr.bf16.mxu0 0
      %626 = vmatpush2.bf16.msra.mxu0 0
      %627 = vmatprep.subr.bf16.mxu0 0
      %628 = vmatpush2.bf16.msra.mxu0 0
      %629 = vmatprep.subr.bf16.mxu0 0
      %630 = vmatpush2.bf16.msra.mxu0 0
      %631 = vmatprep.subr.bf16.mxu0 0
      %632 = vmatpush2.bf16.msra.mxu0 0
      %633 = vmatprep.subr.bf16.mxu0 0
      %634 = vmatpush2.bf16.msra.mxu0 0
      %635 = vmatprep.mubr.bf16.mxu0 0
      %636 = vmatmul.mubr.bf16.gmra.mxu0 %v588
      %v637 = vpop.f32.mrf.mxu0
      %v638 = vadd.f32 %v525, %v637
      %v639 = vpop.f32.mrf.mxu0
      %v640 = vpop.f32.mrf.mxu0
      %v641 = vadd.f32 %v525, %v640
      %v642 = vpop.f32.mrf.mxu0
      %643 = vmatprep.mubr.bf16.mxu0 0
      %644 = vmatmul.mubr.bf16.gmra.mxu0 %v591
      %v645 = vpop.f32.mrf.mxu0
      %v646 = vadd.f32 %v525, %v645
      %v647 = vpop.f32.mrf.mxu0
      %v648 = vpop.f32.mrf.mxu0
      %v649 = vadd.f32 %v525, %v648
      %v650 = vpop.f32.mrf.mxu0
      %651 = vmatprep.mubr.bf16.mxu0 0
      %652 = vmatmul.mubr.bf16.gmra.mxu0 %v594
      %v653 = vpop.f32.mrf.mxu0
      %v654 = vadd.f32 %v525, %v653
      %v655 = vpop.f32.mrf.mxu0
      %v656 = vpop.f32.mrf.mxu0
      %v657 = vadd.f32 %v525, %v656
      %v658 = vpop.f32.mrf.mxu0
      %659 = vmatprep.mubr.bf16.mxu0 0
      %660 = vmatmul.mubr.bf16.gmra.mxu0 %v597
      %v661 = vpop.f32.mrf.mxu0
      %v662 = vadd.f32 %v525, %v661
      %v663 = vpop.f32.mrf.mxu0
      %v664 = vpop.f32.mrf.mxu0
      %v665 = vadd.f32 %v525, %v664
      %v666 = vpop.f32.mrf.mxu0
      %667 = vdwg.mxu0
      %v668 = vmax.f32 %v638, 0.0
      %v669 = vmax.f32 %v641, 0.0
      %v670 = vmax.f32 %v646, 0.0
      %v671 = vmax.f32 %v649, 0.0
      %v672 = vmax.f32 %v654, 0.0
      %v673 = vmax.f32 %v657, 0.0
      %v674 = vmax.f32 %v662, 0.0
      %v675 = vmax.f32 %v665, 0.0
      %v676 = vpack.c.bf16 %v669, %v668
      %v677 = vpack.c.bf16 %v671, %v670
      %v678 = vpack.c.bf16 %v673, %v672
      %v679 = vpack.c.bf16 %v675, %v674
      %v680 = vld [vmem:[%s3] sm:$0xf]
      %v681 = vld [vmem:[%s3 + $0x4] sm:$0xf]
      %v682 = vld [vmem:[%s3 + $0x8] sm:$0xf]
      %v683 = vld [vmem:[%s3 + $0xc] sm:$0xf]
      %v684 = vld [vmem:[%s3 + $0x10] sm:$0xf]
      %v685 = vld [vmem:[%s3 + $0x14] sm:$0xf]
      %v686 = vld [vmem:[%s3 + $0x18] sm:$0x1]
      %v687 = vld [vmem:[%s4] sm:$0x1]
      %v689 = vlaneseq
      %v690 = vshrl.u32 %v689, 7
      %v691 = vsub.s32 0, %v690
      %v692 = vrot.slane %v687, %v691
      %v701 = vunpack.c.l.b16 %v680
      %v702 = vunpack.c.l.b16 %v681
      %v703 = vunpack.c.l.b16 %v682
      %v704 = vunpack.c.l.b16 %v683
      %v705 = vunpack.c.l.b16 %v684
      %v706 = vunpack.c.l.b16 %v685
      %v707 = vunpack.c.l.b16 %v686
      %v708 = vpack.c.b16 %v702, %v701
      %v709 = vpack.c.b16 %v704, %v703
      %v710 = vpack.c.b16 %v706, %v705
      %v711 = vpack.c.b16 %v707, %v707
      %vm715 = vcmask 408576
      %v717 = vsel %vm715, %v676, 0
      %v720 = vsel %vm715, %v677, 0
      %v723 = vsel %vm715, %v678, 0
      %v726 = vsel %vm715, %v679, 0
      %vm728 = vcmask 1040384
      %v730 = vsel %vm728, %v711, 0
      %732 = vmatprep.subr.bf16.mxu0 0
      %733 = vmatpush1.bf16.msra.mxu0 0
      %734 = vmatprep.subr.bf16.mxu0 0
      %735 = vmatpush1.bf16.msra.mxu0 0
      %736 = vmatprep.subr.bf16.mxu0 0
      %737 = vmatpush1.bf16.msra.mxu0 0
      %738 = vmatprep.subr.bf16.mxu0 0
      %739 = vmatpush1.bf16.msra.mxu0 0
      %740 = vmatprep.subr.bf16.mxu0 0
      %741 = vmatpush1.bf16.msra.mxu0 %v730
      %742 = vmatprep.subr.bf16.mxu0 0
      %743 = vmatpush1.bf16.msra.mxu0 %v710
      %744 = vmatprep.subr.bf16.mxu0 0
      %745 = vmatpush1.bf16.msra.mxu0 %v709
      %746 = vmatprep.subr.bf16.mxu0 0
      %747 = vmatpush1.bf16.msra.mxu0 %v708
      %748 = vmatprep.subr.bf16.mxu0 0
      %749 = vmatpush2.bf16.msra.mxu0 0
      %750 = vmatprep.subr.bf16.mxu0 0
      %751 = vmatpush2.bf16.msra.mxu0 0
      %752 = vmatprep.subr.bf16.mxu0 0
      %753 = vmatpush2.bf16.msra.mxu0 0
      %754 = vmatprep.subr.bf16.mxu0 0
      %755 = vmatpush2.bf16.msra.mxu0 0
      %756 = vmatprep.subr.bf16.mxu0 0
      %757 = vmatpush2.bf16.msra.mxu0 0
      %758 = vmatprep.subr.bf16.mxu0 0
      %759 = vmatpush2.bf16.msra.mxu0 0
      %760 = vmatprep.subr.bf16.mxu0 0
      %761 = vmatpush2.bf16.msra.mxu0 0
      %762 = vmatprep.subr.bf16.mxu0 0
      %763 = vmatpush2.bf16.msra.mxu0 0
      %764 = vmatprep.mubr.bf16.mxu0 0
      %765 = vmatmul.mubr.bf16.gmra.mxu0 %v717
      %v766 = vpop.f32.mrf.mxu0
      %v767 = vadd.f32 %v692, %v766
      %v768 = vpop.f32.mrf.mxu0
      %v769 = vpop.f32.mrf.mxu0
      %v770 = vadd.f32 %v692, %v769
      %v771 = vpop.f32.mrf.mxu0
      %772 = vmatprep.mubr.bf16.mxu0 0
      %773 = vmatmul.mubr.bf16.gmra.mxu0 %v720
      %v774 = vpop.f32.mrf.mxu0
      %v775 = vadd.f32 %v692, %v774
      %v776 = vpop.f32.mrf.mxu0
      %v777 = vpop.f32.mrf.mxu0
      %v778 = vadd.f32 %v692, %v777
      %v779 = vpop.f32.mrf.mxu0
      %780 = vmatprep.mubr.bf16.mxu0 0
      %781 = vmatmul.mubr.bf16.gmra.mxu0 %v723
      %v782 = vpop.f32.mrf.mxu0
      %v783 = vadd.f32 %v692, %v782
      %v784 = vpop.f32.mrf.mxu0
      %v785 = vpop.f32.mrf.mxu0
      %v786 = vadd.f32 %v692, %v785
      %v787 = vpop.f32.mrf.mxu0
      %788 = vmatprep.mubr.bf16.mxu0 0
      %789 = vmatmul.mubr.bf16.gmra.mxu0 %v726
      %v790 = vpop.f32.mrf.mxu0
      %v791 = vadd.f32 %v692, %v790
      %v792 = vpop.f32.mrf.mxu0
      %v793 = vpop.f32.mrf.mxu0
      %v794 = vadd.f32 %v692, %v793
      %v795 = vpop.f32.mrf.mxu0
      %796 = vdwg.mxu0
      %v797 = vmax.f32 %v767, 0.0
      %v798 = vmax.f32 %v770, 0.0
      %v799 = vmax.f32 %v775, 0.0
      %v800 = vmax.f32 %v778, 0.0
      %v801 = vmax.f32 %v783, 0.0
      %v802 = vmax.f32 %v786, 0.0
      %v803 = vmax.f32 %v791, 0.0
      %v804 = vmax.f32 %v794, 0.0
      %v805 = vpack.c.bf16 %v798, %v797
      %v806 = vpack.c.bf16 %v800, %v799
      %v807 = vpack.c.bf16 %v802, %v801
      %v808 = vpack.c.bf16 %v804, %v803
      %v809 = vld [vmem:[%s5] sm:$0xf]
      %v810 = vld [vmem:[%s5 + $0x4] sm:$0xf]
      %v811 = vld [vmem:[%s5 + $0x8] sm:$0x3]
      %v812 = vld [vmem:[%s6] sm:$0x1]
      %v814 = vlaneseq
      %v815 = vshrl.u32 %v814, 7
      %v816 = vsub.s32 0, %v815
      %v817 = vrot.slane %v812, %v816
      %v822 = vunpack.c.l.b16 %v809
      %v823 = vunpack.c.l.b16 %v810
      %v824 = vunpack.c.l.b16 %v811
      %v825 = vpack.c.b16 %v823, %v822
      %v826 = vpack.c.b16 %v824, %v824
      %vm828 = vcmask 162816
      %v830 = vsel %vm828, %v805, 0
      %v833 = vsel %vm828, %v806, 0
      %v836 = vsel %vm828, %v807, 0
      %v839 = vsel %vm828, %v808, 0
      %v842 = vsel %vm599, %v826, 0
      %844 = vmatprep.subr.bf16.mxu0 0
      %845 = vmatpush1.bf16.msra.mxu0 0
      %846 = vmatprep.subr.bf16.mxu0 0
      %847 = vmatpush1.bf16.msra.mxu0 0
      %848 = vmatprep.subr.bf16.mxu0 0
      %849 = vmatpush1.bf16.msra.mxu0 0
      %850 = vmatprep.subr.bf16.mxu0 0
      %851 = vmatpush1.bf16.msra.mxu0 0
      %852 = vmatprep.subr.bf16.mxu0 0
      %853 = vmatpush1.bf16.msra.mxu0 0
      %854 = vmatprep.subr.bf16.mxu0 0
      %855 = vmatpush1.bf16.msra.mxu0 0
      %856 = vmatprep.subr.bf16.mxu0 0
      %857 = vmatpush1.bf16.msra.mxu0 %v842
      %858 = vmatprep.subr.bf16.mxu0 0
      %859 = vmatpush1.bf16.msra.mxu0 %v825
      %860 = vmatprep.subr.bf16.mxu0 0
      %861 = vmatpush2.bf16.msra.mxu0 0
      %862 = vmatprep.subr.bf16.mxu0 0
      %863 = vmatpush2.bf16.msra.mxu0 0
      %864 = vmatprep.subr.bf16.mxu0 0
      %865 = vmatpush2.bf16.msra.mxu0 0
      %866 = vmatprep.subr.bf16.mxu0 0
      %867 = vmatpush2.bf16.msra.mxu0 0
      %868 = vmatprep.subr.bf16.mxu0 0
      %869 = vmatpush2.bf16.msra.mxu0 0
      %870 = vmatprep.subr.bf16.mxu0 0
      %871 = vmatpush2.bf16.msra.mxu0 0
      %872 = vmatprep.subr.bf16.mxu0 0
      %873 = vmatpush2.bf16.msra.mxu0 0
      %874 = vmatprep.subr.bf16.mxu0 0
      %875 = vmatpush2.bf16.msra.mxu0 0
      %876 = vmatprep.mubr.bf16.mxu0 0
      %877 = vmatmul.mubr.bf16.gmra.mxu0 %v830
      %v878 = vpop.f32.mrf.mxu0
      %v879 = vadd.f32 %v817, %v878
      %v880 = vpop.f32.mrf.mxu0
      %v881 = vpop.f32.mrf.mxu0
      %v882 = vadd.f32 %v817, %v881
      %v883 = vpop.f32.mrf.mxu0
      %884 = vmatprep.mubr.bf16.mxu0 0
      %885 = vmatmul.mubr.bf16.gmra.mxu0 %v833
      %v886 = vpop.f32.mrf.mxu0
      %v887 = vadd.f32 %v817, %v886
      %v888 = vpop.f32.mrf.mxu0
      %v889 = vpop.f32.mrf.mxu0
      %v890 = vadd.f32 %v817, %v889
      %v891 = vpop.f32.mrf.mxu0
      %892 = vmatprep.mubr.bf16.mxu0 0
      %893 = vmatmul.mubr.bf16.gmra.mxu0 %v836
      %v894 = vpop.f32.mrf.mxu0
      %v895 = vadd.f32 %v817, %v894
      %v896 = vpop.f32.mrf.mxu0
      %v897 = vpop.f32.mrf.mxu0
      %v898 = vadd.f32 %v817, %v897
      %v899 = vpop.f32.mrf.mxu0
      %900 = vmatprep.mubr.bf16.mxu0 0
      %901 = vmatmul.mubr.bf16.gmra.mxu0 %v839
      %v902 = vpop.f32.mrf.mxu0
      %v903 = vadd.f32 %v817, %v902
      %v904 = vpop.f32.mrf.mxu0
      %v905 = vpop.f32.mrf.mxu0
      %v906 = vadd.f32 %v817, %v905
      %v907 = vpop.f32.mrf.mxu0
      %908 = vdwg.mxu0
      %v909 = vmax.f32 %v879, 0.0
      %v910 = vmax.f32 %v882, 0.0
      %v911 = vmax.f32 %v887, 0.0
      %v912 = vmax.f32 %v890, 0.0
      %v913 = vmax.f32 %v895, 0.0
      %v914 = vmax.f32 %v898, 0.0
      %v915 = vmax.f32 %v903, 0.0
      %v916 = vmax.f32 %v906, 0.0
      %v917 = vpack.c.bf16 %v910, %v909
      %v918 = vpack.c.bf16 %v912, %v911
      %v919 = vpack.c.bf16 %v914, %v913
      %v920 = vpack.c.bf16 %v916, %v915
      %v921 = vld [vmem:[%s7] sm:$0xf]
      %v922 = vld [vmem:[%s8] sm:$0x1]
      %v924 = vlaneseq
      %v925 = vshrl.u32 %v924, 7
      %v926 = vsub.s32 0, %v925
      %v927 = vrot.slane %v922, %v926
      %vm929 = vcmask 64512
      %v931 = vsel %vm929, %v917, 0
      %v934 = vsel %vm929, %v918, 0
      %v937 = vsel %vm929, %v919, 0
      %v940 = vsel %vm929, %v920, 0
      %vm942 = vcmask 1043456
      %v944 = vsel %vm942, %v921, 0
      %946 = vmatprep.subr.bf16.mxu0 0
      %947 = vmatpush1.bf16.msra.mxu0 0
      %948 = vmatprep.subr.bf16.mxu0 0
      %949 = vmatpush1.bf16.msra.mxu0 0
      %950 = vmatprep.subr.bf16.mxu0 0
      %951 = vmatpush1.bf16.msra.mxu0 0
      %952 = vmatprep.subr.bf16.mxu0 0
      %953 = vmatpush1.bf16.msra.mxu0 0
      %954 = vmatprep.subr.bf16.mxu0 0
      %955 = vmatpush1.bf16.msra.mxu0 0
      %956 = vmatprep.subr.bf16.mxu0 0
      %957 = vmatpush1.bf16.msra.mxu0 0
      %958 = vmatprep.subr.bf16.mxu0 0
      %959 = vmatpush1.bf16.msra.mxu0 0
      %960 = vmatprep.subr.bf16.mxu0 0
      %961 = vmatpush1.bf16.msra.mxu0 %v944
      %962 = vmatprep.subr.bf16.mxu0 0
      %963 = vmatpush2.bf16.msra.mxu0 0
      %964 = vmatprep.subr.bf16.mxu0 0
      %965 = vmatpush2.bf16.msra.mxu0 0
      %966 = vmatprep.subr.bf16.mxu0 0
      %967 = vmatpush2.bf16.msra.mxu0 0
      %968 = vmatprep.subr.bf16.mxu0 0
      %969 = vmatpush2.bf16.msra.mxu0 0
      %970 = vmatprep.subr.bf16.mxu0 0
      %971 = vmatpush2.bf16.msra.mxu0 0
      %972 = vmatprep.subr.bf16.mxu0 0
      %973 = vmatpush2.bf16.msra.mxu0 0
      %974 = vmatprep.subr.bf16.mxu0 0
      %975 = vmatpush2.bf16.msra.mxu0 0
      %976 = vmatprep.subr.bf16.mxu0 0
      %977 = vmatpush2.bf16.msra.mxu0 0
      %978 = vmatprep.mubr.bf16.mxu0 0
      %979 = vmatmul.mubr.bf16.gmra.mxu0 %v931
      %v980 = vpop.f32.mrf.mxu0
      %v981 = vadd.f32 %v927, %v980
      %v982 = vpop.f32.mrf.mxu0
      %v983 = vpop.f32.mrf.mxu0
      %v984 = vadd.f32 %v927, %v983
      %v985 = vpop.f32.mrf.mxu0
      %986 = vmatprep.mubr.bf16.mxu0 0
      %987 = vmatmul.mubr.bf16.gmra.mxu0 %v934
      %v988 = vpop.f32.mrf.mxu0
      %v989 = vadd.f32 %v927, %v988
      %v990 = vpop.f32.mrf.mxu0
      %v991 = vpop.f32.mrf.mxu0
      %v992 = vadd.f32 %v927, %v991
      %v993 = vpop.f32.mrf.mxu0
      %994 = vmatprep.mubr.bf16.mxu0 0
      %995 = vmatmul.mubr.bf16.gmra.mxu0 %v937
      %v996 = vpop.f32.mrf.mxu0
      %v997 = vadd.f32 %v927, %v996
      %v998 = vpop.f32.mrf.mxu0
      %v999 = vpop.f32.mrf.mxu0
      %v1000 = vadd.f32 %v927, %v999
      %v1001 = vpop.f32.mrf.mxu0
      %1002 = vmatprep.mubr.bf16.mxu0 0
      %1003 = vmatmul.mubr.bf16.gmra.mxu0 %v940
      %v1004 = vpop.f32.mrf.mxu0
      %v1005 = vadd.f32 %v927, %v1004
      %v1006 = vpop.f32.mrf.mxu0
      %v1007 = vpop.f32.mrf.mxu0
      %v1008 = vadd.f32 %v927, %v1007
      %v1009 = vpop.f32.mrf.mxu0
      %1010 = vdwg.mxu0
      %v1011 = vmax.f32 %v981, 0.0
      %v1012 = vmax.f32 %v984, 0.0
      %v1013 = vmax.f32 %v989, 0.0
      %v1014 = vmax.f32 %v992, 0.0
      %v1015 = vmax.f32 %v997, 0.0
      %v1016 = vmax.f32 %v1000, 0.0
      %v1017 = vmax.f32 %v1005, 0.0
      %v1018 = vmax.f32 %v1008, 0.0
      %v1019 = vpack.c.bf16 %v1012, %v1011
      %v1020 = vpack.c.bf16 %v1014, %v1013
      %v1021 = vpack.c.bf16 %v1016, %v1015
      %v1022 = vpack.c.bf16 %v1018, %v1017
      %v1023 = vld [vmem:[%s9] sm:$0xf]
      %v1024 = vld [vmem:[%s10] sm:$0x1]
      %v1026 = vlaneseq
      %v1027 = vshrl.u32 %v1026, 7
      %v1028 = vsub.s32 0, %v1027
      %v1029 = vrot.slane %v1024, %v1028
      %v1032 = vsel %vm929, %v1019, 0
      %v1035 = vsel %vm929, %v1020, 0
      %v1038 = vsel %vm929, %v1021, 0
      %v1041 = vsel %vm929, %v1022, 0
      %v1044 = vsel %vm942, %v1023, 0
      %1046 = vmatprep.subr.bf16.mxu0 0
      %1047 = vmatpush1.bf16.msra.mxu0 0
      %1048 = vmatprep.subr.bf16.mxu0 0
      %1049 = vmatpush1.bf16.msra.mxu0 0
      %1050 = vmatprep.subr.bf16.mxu0 0
      %1051 = vmatpush1.bf16.msra.mxu0 0
      %1052 = vmatprep.subr.bf16.mxu0 0
      %1053 = vmatpush1.bf16.msra.mxu0 0
      %1054 = vmatprep.subr.bf16.mxu0 0
      %1055 = vmatpush1.bf16.msra.mxu0 0
      %1056 = vmatprep.subr.bf16.mxu0 0
      %1057 = vmatpush1.bf16.msra.mxu0 0
      %1058 = vmatprep.subr.bf16.mxu0 0
      %1059 = vmatpush1.bf16.msra.mxu0 0
      %1060 = vmatprep.subr.bf16.mxu0 0
      %1061 = vmatpush1.bf16.msra.mxu0 %v1044
      %1062 = vmatprep.subr.bf16.mxu0 0
      %1063 = vmatpush2.bf16.msra.mxu0 0
      %1064 = vmatprep.subr.bf16.mxu0 0
      %1065 = vmatpush2.bf16.msra.mxu0 0
      %1066 = vmatprep.subr.bf16.mxu0 0
      %1067 = vmatpush2.bf16.msra.mxu0 0
      %1068 = vmatprep.subr.bf16.mxu0 0
      %1069 = vmatpush2.bf16.msra.mxu0 0
      %1070 = vmatprep.subr.bf16.mxu0 0
      %1071 = vmatpush2.bf16.msra.mxu0 0
      %1072 = vmatprep.subr.bf16.mxu0 0
      %1073 = vmatpush2.bf16.msra.mxu0 0
      %1074 = vmatprep.subr.bf16.mxu0 0
      %1075 = vmatpush2.bf16.msra.mxu0 0
      %1076 = vmatprep.subr.bf16.mxu0 0
      %1077 = vmatpush2.bf16.msra.mxu0 0
      %1078 = vmatprep.mubr.bf16.mxu0 0
      %1079 = vmatmul.mubr.bf16.gmra.mxu0 %v1032
      %v1080 = vpop.f32.mrf.mxu0
      %v1081 = vadd.f32 %v1029, %v1080
      %v1082 = vpop.f32.mrf.mxu0
      %v1083 = vpop.f32.mrf.mxu0
      %v1084 = vadd.f32 %v1029, %v1083
      %v1085 = vpop.f32.mrf.mxu0
      %1086 = vmatprep.mubr.bf16.mxu0 0
      %1087 = vmatmul.mubr.bf16.gmra.mxu0 %v1035
      %v1088 = vpop.f32.mrf.mxu0
      %v1089 = vadd.f32 %v1029, %v1088
      %v1090 = vpop.f32.mrf.mxu0
      %v1091 = vpop.f32.mrf.mxu0
      %v1092 = vadd.f32 %v1029, %v1091
      %v1093 = vpop.f32.mrf.mxu0
      %1094 = vmatprep.mubr.bf16.mxu0 0
      %1095 = vmatmul.mubr.bf16.gmra.mxu0 %v1038
      %v1096 = vpop.f32.mrf.mxu0
      %v1097 = vadd.f32 %v1029, %v1096
      %v1098 = vpop.f32.mrf.mxu0
      %v1099 = vpop.f32.mrf.mxu0
      %v1100 = vadd.f32 %v1029, %v1099
      %v1101 = vpop.f32.mrf.mxu0
      %1102 = vmatprep.mubr.bf16.mxu0 0
      %1103 = vmatmul.mubr.bf16.gmra.mxu0 %v1041
      %v1104 = vpop.f32.mrf.mxu0
      %v1105 = vadd.f32 %v1029, %v1104
      %v1106 = vpop.f32.mrf.mxu0
      %v1107 = vpop.f32.mrf.mxu0
      %v1108 = vadd.f32 %v1029, %v1107
      %v1109 = vpop.f32.mrf.mxu0
      %1110 = vdwg.mxu0
      %v1111 = vmax.f32 %v1081, 0.0
      %v1112 = vmax.f32 %v1084, 0.0
      %v1113 = vmax.f32 %v1089, 0.0
      %v1114 = vmax.f32 %v1092, 0.0
      %v1115 = vmax.f32 %v1097, 0.0
      %v1116 = vmax.f32 %v1100, 0.0
      %v1117 = vmax.f32 %v1105, 0.0
      %v1118 = vmax.f32 %v1108, 0.0
      %v1119 = vpack.c.bf16 %v1112, %v1111
      %v1120 = vpack.c.bf16 %v1114, %v1113
      %v1121 = vpack.c.bf16 %v1116, %v1115
      %v1122 = vpack.c.bf16 %v1118, %v1117
      %v1123 = vld [vmem:[%s11] sm:$0xf]
      %v1124 = vld [vmem:[%s11 + $0x4] sm:$0xf]
      %v1125 = vld [vmem:[%s11 + $0x8] sm:$0x3]
      %v1126 = vld [vmem:[%s12] sm:$0x1]
      %v1128 = vlaneseq
      %v1129 = vshrl.u32 %v1128, 7
      %v1130 = vsub.s32 0, %v1129
      %v1131 = vrot.slane %v1126, %v1130
      %v1136 = vunpack.c.l.b16 %v1123
      %v1137 = vunpack.c.l.b16 %v1124
      %v1138 = vunpack.c.l.b16 %v1125
      %v1139 = vpack.c.b16 %v1137, %v1136
      %v1140 = vpack.c.b16 %v1138, %v1138
      %v1143 = vsel %vm828, %v1119, 0
      %v1146 = vsel %vm828, %v1120, 0
      %v1149 = vsel %vm828, %v1121, 0
      %v1152 = vsel %vm828, %v1122, 0
      %v1155 = vsel %vm599, %v1140, 0
      %1157 = vmatprep.subr.bf16.mxu0 0
      %1158 = vmatpush1.bf16.msra.mxu0 0
      %1159 = vmatprep.subr.bf16.mxu0 0
      %1160 = vmatpush1.bf16.msra.mxu0 0
      %1161 = vmatprep.subr.bf16.mxu0 0
      %1162 = vmatpush1.bf16.msra.mxu0 0
      %1163 = vmatprep.subr.bf16.mxu0 0
      %1164 = vmatpush1.bf16.msra.mxu0 0
      %1165 = vmatprep.subr.bf16.mxu0 0
      %1166 = vmatpush1.bf16.msra.mxu0 0
      %1167 = vmatprep.subr.bf16.mxu0 0
      %1168 = vmatpush1.bf16.msra.mxu0 0
      %1169 = vmatprep.subr.bf16.mxu0 0
      %1170 = vmatpush1.bf16.msra.mxu0 %v1155
      %1171 = vmatprep.subr.bf16.mxu0 0
      %1172 = vmatpush1.bf16.msra.mxu0 %v1139
      %1173 = vmatprep.subr.bf16.mxu0 0
      %1174 = vmatpush2.bf16.msra.mxu0 0
      %1175 = vmatprep.subr.bf16.mxu0 0
      %1176 = vmatpush2.bf16.msra.mxu0 0
      %1177 = vmatprep.subr.bf16.mxu0 0
      %1178 = vmatpush2.bf16.msra.mxu0 0
      %1179 = vmatprep.subr.bf16.mxu0 0
      %1180 = vmatpush2.bf16.msra.mxu0 0
      %1181 = vmatprep.subr.bf16.mxu0 0
      %1182 = vmatpush2.bf16.msra.mxu0 0
      %1183 = vmatprep.subr.bf16.mxu0 0
      %1184 = vmatpush2.bf16.msra.mxu0 0
      %1185 = vmatprep.subr.bf16.mxu0 0
      %1186 = vmatpush2.bf16.msra.mxu0 0
      %1187 = vmatprep.subr.bf16.mxu0 0
      %1188 = vmatpush2.bf16.msra.mxu0 0
      %1189 = vmatprep.mubr.bf16.mxu0 0
      %1190 = vmatmul.mubr.bf16.gmra.mxu0 %v1143
      %v1191 = vpop.f32.mrf.mxu0
      %v1192 = vadd.f32 %v1131, %v1191
      %v1193 = vpop.f32.mrf.mxu0
      %v1194 = vpop.f32.mrf.mxu0
      %v1195 = vadd.f32 %v1131, %v1194
      %v1196 = vpop.f32.mrf.mxu0
      %1197 = vmatprep.mubr.bf16.mxu0 0
      %1198 = vmatmul.mubr.bf16.gmra.mxu0 %v1146
      %v1199 = vpop.f32.mrf.mxu0
      %v1200 = vadd.f32 %v1131, %v1199
      %v1201 = vpop.f32.mrf.mxu0
      %v1202 = vpop.f32.mrf.mxu0
      %v1203 = vadd.f32 %v1131, %v1202
      %v1204 = vpop.f32.mrf.mxu0
      %1205 = vmatprep.mubr.bf16.mxu0 0
      %1206 = vmatmul.mubr.bf16.gmra.mxu0 %v1149
      %v1207 = vpop.f32.mrf.mxu0
      %v1208 = vadd.f32 %v1131, %v1207
      %v1209 = vpop.f32.mrf.mxu0
      %v1210 = vpop.f32.mrf.mxu0
      %v1211 = vadd.f32 %v1131, %v1210
      %v1212 = vpop.f32.mrf.mxu0
      %1213 = vmatprep.mubr.bf16.mxu0 0
      %1214 = vmatmul.mubr.bf16.gmra.mxu0 %v1152
      %v1215 = vpop.f32.mrf.mxu0
      %v1216 = vadd.f32 %v1131, %v1215
      %v1217 = vpop.f32.mrf.mxu0
      %v1218 = vpop.f32.mrf.mxu0
      %v1219 = vadd.f32 %v1131, %v1218
      %v1220 = vpop.f32.mrf.mxu0
      %1221 = vdwg.mxu0
      %v1222 = vmax.f32 %v1192, 0.0
      %v1223 = vmax.f32 %v1195, 0.0
      %v1224 = vmax.f32 %v1200, 0.0
      %v1225 = vmax.f32 %v1203, 0.0
      %v1226 = vmax.f32 %v1208, 0.0
      %v1227 = vmax.f32 %v1211, 0.0
      %v1228 = vmax.f32 %v1216, 0.0
      %v1229 = vmax.f32 %v1219, 0.0
      %v1230 = vpack.c.bf16 %v1223, %v1222
      %v1231 = vpack.c.bf16 %v1225, %v1224
      %v1232 = vpack.c.bf16 %v1227, %v1226
      %v1233 = vpack.c.bf16 %v1229, %v1228
      %v1234 = vld [vmem:[%s13] sm:$0xf]
      %v1235 = vld [vmem:[%s13 + $0x4] sm:$0xf]
      %v1236 = vld [vmem:[%s13 + $0x8] sm:$0xf]
      %v1237 = vld [vmem:[%s13 + $0xc] sm:$0xf]
      %v1238 = vld [vmem:[%s13 + $0x10] sm:$0xf]
      %v1239 = vld [vmem:[%s13 + $0x14] sm:$0xf]
      %v1240 = vld [vmem:[%s13 + $0x18] sm:$0x1]
      %v1241 = vld [vmem:[%s14] sm:$0x1]
      %v1243 = vlaneseq
      %v1244 = vshrl.u32 %v1243, 7
      %v1245 = vsub.s32 0, %v1244
      %v1246 = vrot.slane %v1241, %v1245
      %v1255 = vunpack.c.l.b16 %v1234
      %v1256 = vunpack.c.l.b16 %v1235
      %v1257 = vunpack.c.l.b16 %v1236
      %v1258 = vunpack.c.l.b16 %v1237
      %v1259 = vunpack.c.l.b16 %v1238
      %v1260 = vunpack.c.l.b16 %v1239
      %v1261 = vunpack.c.l.b16 %v1240
      %v1262 = vpack.c.b16 %v1256, %v1255
      %v1263 = vpack.c.b16 %v1258, %v1257
      %v1264 = vpack.c.b16 %v1260, %v1259
      %v1265 = vpack.c.b16 %v1261, %v1261
      %v1270 = vsel %vm715, %v1230, 0
      %v1273 = vsel %vm715, %v1231, 0
      %v1276 = vsel %vm715, %v1232, 0
      %v1279 = vsel %vm715, %v1233, 0
      %v1282 = vsel %vm728, %v1265, 0
      %1284 = vmatprep.subr.bf16.mxu0 0
      %1285 = vmatpush1.bf16.msra.mxu0 0
      %1286 = vmatprep.subr.bf16.mxu0 0
      %1287 = vmatpush1.bf16.msra.mxu0 0
      %1288 = vmatprep.subr.bf16.mxu0 0
      %1289 = vmatpush1.bf16.msra.mxu0 0
      %1290 = vmatprep.subr.bf16.mxu0 0
      %1291 = vmatpush1.bf16.msra.mxu0 0
      %1292 = vmatprep.subr.bf16.mxu0 0
      %1293 = vmatpush1.bf16.msra.mxu0 %v1282
      %1294 = vmatprep.subr.bf16.mxu0 0
      %1295 = vmatpush1.bf16.msra.mxu0 %v1264
      %1296 = vmatprep.subr.bf16.mxu0 0
      %1297 = vmatpush1.bf16.msra.mxu0 %v1263
      %1298 = vmatprep.subr.bf16.mxu0 0
      %1299 = vmatpush1.bf16.msra.mxu0 %v1262
      %1300 = vmatprep.subr.bf16.mxu0 0
      %1301 = vmatpush2.bf16.msra.mxu0 0
      %1302 = vmatprep.subr.bf16.mxu0 0
      %1303 = vmatpush2.bf16.msra.mxu0 0
      %1304 = vmatprep.subr.bf16.mxu0 0
      %1305 = vmatpush2.bf16.msra.mxu0 0
      %1306 = vmatprep.subr.bf16.mxu0 0
      %1307 = vmatpush2.bf16.msra.mxu0 0
      %1308 = vmatprep.subr.bf16.mxu0 0
      %1309 = vmatpush2.bf16.msra.mxu0 0
      %1310 = vmatprep.subr.bf16.mxu0 0
      %1311 = vmatpush2.bf16.msra.mxu0 0
      %1312 = vmatprep.subr.bf16.mxu0 0
      %1313 = vmatpush2.bf16.msra.mxu0 0
      %1314 = vmatprep.subr.bf16.mxu0 0
      %1315 = vmatpush2.bf16.msra.mxu0 0
      %1316 = vmatprep.mubr.bf16.mxu0 0
      %1317 = vmatmul.mubr.bf16.gmra.mxu0 %v1270
      %v1318 = vpop.f32.mrf.mxu0
      %v1319 = vadd.f32 %v1246, %v1318
      %v1320 = vpop.f32.mrf.mxu0
      %v1321 = vpop.f32.mrf.mxu0
      %v1322 = vadd.f32 %v1246, %v1321
      %v1323 = vpop.f32.mrf.mxu0
      %1324 = vmatprep.mubr.bf16.mxu0 0
      %1325 = vmatmul.mubr.bf16.gmra.mxu0 %v1273
      %v1326 = vpop.f32.mrf.mxu0
      %v1327 = vadd.f32 %v1246, %v1326
      %v1328 = vpop.f32.mrf.mxu0
      %v1329 = vpop.f32.mrf.mxu0
      %v1330 = vadd.f32 %v1246, %v1329
      %v1331 = vpop.f32.mrf.mxu0
      %1332 = vmatprep.mubr.bf16.mxu0 0
      %1333 = vmatmul.mubr.bf16.gmra.mxu0 %v1276
      %v1334 = vpop.f32.mrf.mxu0
      %v1335 = vadd.f32 %v1246, %v1334
      %v1336 = vpop.f32.mrf.mxu0
      %v1337 = vpop.f32.mrf.mxu0
      %v1338 = vadd.f32 %v1246, %v1337
      %v1339 = vpop.f32.mrf.mxu0
      %1340 = vmatprep.mubr.bf16.mxu0 0
      %1341 = vmatmul.mubr.bf16.gmra.mxu0 %v1279
      %v1342 = vpop.f32.mrf.mxu0
      %v1343 = vadd.f32 %v1246, %v1342
      %v1344 = vpop.f32.mrf.mxu0
      %v1345 = vpop.f32.mrf.mxu0
      %v1346 = vadd.f32 %v1246, %v1345
      %v1347 = vpop.f32.mrf.mxu0
      %1348 = vdwg.mxu0
      %v1349 = vsub.f32 0.0, %v1319
      %v1350 = vsub.f32 0.0, %v1322
      %v1351 = vsub.f32 0.0, %v1327
      %v1352 = vsub.f32 0.0, %v1330
      %v1353 = vsub.f32 0.0, %v1335
      %v1354 = vsub.f32 0.0, %v1338
      %v1355 = vsub.f32 0.0, %v1343
      %v1356 = vsub.f32 0.0, %v1346
      %v1357 = vmul.f32 %v1349, 1.442695
      %v1358 = vpow.pop %v1357
      %v1359 = vmul.f32 %v1350, 1.442695
      %v1360 = vpow.pop %v1359
      %v1361 = vmul.f32 %v1351, 1.442695
      %v1362 = vpow.pop %v1361
      %v1363 = vmul.f32 %v1352, 1.442695
      %v1364 = vpow.pop %v1363
      %v1365 = vmul.f32 %v1353, 1.442695
      %v1366 = vpow.pop %v1365
      %v1367 = vmul.f32 %v1354, 1.442695
      %v1368 = vpow.pop %v1367
      %v1369 = vmul.f32 %v1355, 1.442695
      %v1370 = vpow.pop %v1369
      %v1371 = vmul.f32 %v1356, 1.442695
      %v1372 = vpow.pop %v1371
      %v1373 = vadd.f32 %v1358, 1.0
      %v1374 = vadd.f32 %v1360, 1.0
      %v1375 = vadd.f32 %v1362, 1.0
      %v1376 = vadd.f32 %v1364, 1.0
      %v1377 = vadd.f32 %v1366, 1.0
      %v1378 = vadd.f32 %v1368, 1.0
      %v1379 = vadd.f32 %v1370, 1.0
      %v1380 = vadd.f32 %v1372, 1.0
      %v1381 = vrcp.pop %v1373
      %v1382 = vrcp.pop %v1374
      %v1383 = vrcp.pop %v1375
      %v1384 = vrcp.pop %v1376
      %v1385 = vrcp.pop %v1377
      %v1386 = vrcp.pop %v1378
      %v1387 = vrcp.pop %v1379
      %v1388 = vrcp.pop %v1380
      %1389 = vst.msk [vmem:[%s496] sm:$0xff] %vm586, %v1381
      %1390 = vst.msk [vmem:[%s496 + $0x8] sm:$0xff] %vm586, %v1382
      %1391 = vst.msk [vmem:[%s496 + $0x10] sm:$0xff] %vm586, %v1383
      %1392 = vst.msk [vmem:[%s496 + $0x18] sm:$0xff] %vm586, %v1384
      %1393 = vst.msk [vmem:[%s496 + $0x20] sm:$0xff] %vm586, %v1385
      %1394 = vst.msk [vmem:[%s496 + $0x28] sm:$0xff] %vm586, %v1386
      %1395 = vst.msk [vmem:[%s496 + $0x30] sm:$0xff] %vm586, %v1387
      %1396 = vst.msk [vmem:[%s496 + $0x38] sm:$0xff] %vm586, %v1388
      %s1397 = smul.u32 8, %s26
      %p1398 = scmp.lt.s32.totalorder %s1397, 31
      %s1399 = scalar_select %p1398, %s1397, 31
      %s1400 = smul.addr %s1399, 8
      %s1401 = scalar_lea.vmem %s15, %s1400
      // Predicated region
      $region81: #{tpu_custom_call.1} parent=79 // pred_check
        %p1402 = pneg %p364
      $region82: #{tpu_custom_call.1} parent=79 // pred_check_branch
        %1404 = sbr.rel (%p1402) target = $region84
      $region83: #{tpu_custom_call.1} parent=79 // pred_region
        %s1405 = smul.u32 8, %s26
      $region84: #{tpu_custom_call.1} parent=79 // pred_fallthru
        _
    $region80: #{tpu_custom_call.1} parent=5 // pred_fallthru
      _
    %p1406 = scmp.le.s32.totalorder 2, %s21
    // Predicated region
    $region85: #{tpu_custom_call.1} parent=5 // pred_check
      %p1407 = pneg %p1406
    $region86: #{tpu_custom_call.1} parent=5 // pred_check_branch
      %1409 = sbr.rel (%p1407) target = $region88
    $region87: #{tpu_custom_call.1} parent=5 // pred_region
      %s1410 = ssub.s32 %s21, 2
      // Predicated region
      $region89: #{tpu_custom_call.1} parent=87 // pred_check
        %p1411 = pneg %p370
      $region90: #{tpu_custom_call.1} parent=87 // pred_check_branch
        %1413 = sbr.rel (%p1411) target = $region92
      $region91: #{tpu_custom_call.1} parent=87 // pred_region
        %s1414 = smul.u32 8, %s27
        %p1415 = scmp.lt.s32.totalorder %s1414, 31
        %s1416 = scalar_select %p1415, %s1414, 31
        %s1417 = smul.addr %s1416, 8
        %s1418 = scalar_lea.vmem %s15, %s1417
      $region92: #{tpu_custom_call.1} parent=87 // pred_fallthru
        _
    $region88: #{tpu_custom_call.1} parent=5 // pred_fallthru
      _
  $region6: #{tpu_custom_call.1} parent=0 // loop_footer
    %s25 = sadd.s32 1, %s21
  $region7: #{tpu_custom_call.1} parent=0 // loop_footer_branch
    %20 = sbr.rel target = $region3
  $region8: #{tpu_custom_call.1} parent=0 // loop_exit
    _

</llo_original>
